<compile_context>
chip_gen: v7x
topology: tpu7x:2x2x1
jax: 0.10.0
libtpu: 0.0.40
codegen_flags: <defaults>
</compile_context>

<pallas_src>
import functools

import jax
import jax.numpy as jnp
from jax import lax
from jax.experimental import pallas as pl
from jax.experimental.pallas import tpu as pltpu


def _round_up(x, m):
    return (x + m - 1) // m * m


# ----------------------------------------------------------------------------
# Fused per-side kernel
# ----------------------------------------------------------------------------
def _dgsr_fused_kernel(srch_ref, dstf_ref, idx_ref, ro_ref, last_ref,
                       wdst_ref, te_ref, wgt_ref, wgb_ref, o_ref,
                       *, hidden, n_nbr):
    f32 = jnp.float32
    bf16 = jnp.bfloat16
    tile_n, dp = dstf_ref.shape
    n_src = srch_ref.shape[0]
    N = n_nbr
    rows = tile_n * N
    scale = 1.0 / jnp.sqrt(jnp.float32(hidden))

    dstf = dstf_ref[...]                                   # (Tn, dp) f32 raw dst feats

    # ---- destination projection (nn.Linear, no bias): x @ W^T, bf16 MXU ----
    dst = jnp.dot(dstf.astype(bf16), wdst_ref[...],
                  preferred_element_type=f32)              # (Tn, dp) f32

    # ---- neighbor gather of the PRE-PROJECTED source table ----
    # 2-D one-hot built directly against the pre-flattened (Tn*N, 1) id column.
    oh_src = (lax.broadcasted_iota(jnp.int32, (rows, n_src), 1)
              == idx_ref[...]).astype(bf16)                # (Tn*N, n_src)
    nbr = jnp.dot(oh_src, srch_ref[...],
                  preferred_element_type=f32).reshape(tile_n, N, dp)

    # ---- merged time-encoding lookup: one matmul against [te_q | te_k] ----
    oh_te = (lax.broadcasted_iota(jnp.int32, (rows, N), 1)
             == ro_ref[...]).astype(bf16)                  # (Tn*N, N)
    te = jnp.dot(oh_te, te_ref[...],
                 preferred_element_type=f32).reshape(tile_n, N, 2 * dp)
    teq = te[:, :, :dp]                                    # split at dp=128 lanes
    tek = te[:, :, dp:]

    # ---- long-term (orgat) attention ----
    e = jnp.sum((teq + nbr) * dst[:, None, :], axis=2) * scale         # (Tn, N)
    e = e - jnp.max(e, axis=1, keepdims=True)
    p = jnp.exp(e)
    alpha = p * pl.reciprocal(jnp.sum(p, axis=1, keepdims=True), approx=True)
    h_long = jnp.sum(alpha[:, :, None] * (nbr + tek), axis=1)          # (Tn, dp)

    # ---- short-term ('att') attention vs the most-recent neighbor ----
    last_oh = (lax.broadcasted_iota(jnp.int32, (tile_n, N), 1)
               == last_ref[...]).astype(f32)                           # (Tn, N)
    last_em = jnp.sum(last_oh[:, :, None] * nbr, axis=1)               # (Tn, dp)
    e1 = jnp.sum(last_em[:, None, :] * nbr, axis=2) * scale            # (Tn, N)
    e1 = e1 - jnp.max(e1, axis=1, keepdims=True)
    p1 = jnp.exp(e1)
    alpha1 = p1 * pl.reciprocal(jnp.sum(p1, axis=1, keepdims=True), approx=True)
    h_short = jnp.sum(alpha1[:, :, None] * nbr, axis=1)                # (Tn, dp)

    # ---- agg_gate: two (dp, dp) matmuls summed (no (Tn, 2dp) concat) ----
    new_h = (jnp.dot(h_long.astype(bf16), wgt_ref[...],
                     preferred_element_type=f32)
             + jnp.dot(h_short.astype(bf16), wgb_ref[...],
                       preferred_element_type=f32))                    # (Tn, dp)

    # ---- residual update: elu(new + old), overflow-safe negative branch ----
    z = new_h + dstf
    o_ref[...] = jnp.where(z > 0, z, jnp.exp(jnp.minimum(z, 0.0)) - 1.0)


# ----------------------------------------------------------------------------
# Wrapper / glue
# ----------------------------------------------------------------------------
def _pad_last(x, dp):
    d = x.shape[-1]
    if d == dp:
        return x
    pad = [(0, 0)] * (x.ndim - 1) + [(0, dp - d)]
    return jnp.pad(x, pad)


def _pad_square(w, dp):
    d0, d1 = w.shape
    return jnp.pad(w, ((0, dp - d0), (0, dp - d1)))


def _choose_tile(n):
    """Largest row tile that divides n, is a multiple of 8, gives >=2 grid
    steps when possible (v7x megacore), capped at 256 rows."""
    cap = min(256, max(8, n // 2))
    cap -= cap % 8
    for t in range(cap, 7, -8):
        if n % t == 0:
            return t
    return n          # fallback: single block (block dims == full array dims)


def _vmem_limit_bytes():
    # ~48 MiB on v7x (64 MiB physical/TC), ~96 MiB on v5e/v6e (128 MiB).
    cap = 64 * 1024 * 1024
    try:
        info = pltpu.get_tpu_info()
        cap = int(getattr(info, "vmem_capacity_bytes", cap))
    except Exception:
        pass
    return int(min(cap * 3 // 4, 96 * 1024 * 1024))


def dgsr_side(src_feat, dst_feat, nbr_idx, nbr_time,
              w_src_t, w_dst_t, te_q_tab, te_k_tab, w_gate_t):
    """One side of graph_update: aggregate src nodes into every dst node."""
    n_dst, d = dst_feat.shape
    n_src = src_feat.shape[0]
    n_nbr = nbr_idx.shape[1]
    dp = _round_up(d, 128)                       # lane-dense feature dim
    bf16 = jnp.bfloat16

    # ---- hoisted once-per-side source projection (done once, not per tile) ----
    src_h = src_feat.astype(jnp.float32) @ w_src_t.astype(jnp.float32)  # (ns, d)
    srch_p = _pad_last(src_h, dp).astype(bf16)

    # zero-padded params / features (padding columns stay exactly 0 end-to-end)
    dst_p = _pad_last(dst_feat.astype(jnp.float32), dp)                 # f32: residual
    wdst_p = _pad_square(w_dst_t.astype(jnp.float32), dp).astype(bf16)
    te_p = jnp.concatenate(
        [_pad_last(te_q_tab.astype(jnp.float32), dp),
         _pad_last(te_k_tab.astype(jnp.float32), dp)], axis=1).astype(bf16)  # (N, 2dp)
    wg = w_gate_t.astype(jnp.float32)                                   # (2d, d)
    wg_top = _pad_square(wg[:d], dp).astype(bf16)
    wg_bot = _pad_square(wg[d:], dp).astype(bf16)

    # re_order = N - argsort(argsort(time)) - 1 (rank 0 = most recent); last = argmax
    order = jnp.argsort(jnp.argsort(nbr_time, axis=1), axis=1)
    re_order = (n_nbr - order - 1).astype(jnp.int32)
    last = jnp.argmax(nbr_time, axis=1).astype(jnp.int32)[:, None]
    idx_flat = nbr_idx.astype(jnp.int32).reshape(n_dst * n_nbr, 1)
    ro_flat = re_order.reshape(n_dst * n_nbr, 1)

    tile_n = _choose_tile(n_dst)
    grid = (n_dst // tile_n,)
    kernel = functools.partial(_dgsr_fused_kernel, hidden=d, n_nbr=n_nbr)

    full = lambda i: (0, 0)
    row = lambda i: (i, 0)

    out = pl.pallas_call(
        kernel,
        out_shape=jax.ShapeDtypeStruct((n_dst, dp), jnp.float32),
        grid_spec=pltpu.PrefetchScalarGridSpec(
            num_scalar_prefetch=0,
            grid=grid,
            in_specs=[
                pl.BlockSpec((n_src, dp), full),            # projected src feats (bf16)
                pl.BlockSpec((tile_n, dp), row),            # raw dst feats (f32)
                pl.BlockSpec((tile_n * n_nbr, 1), row),     # neighbor ids (flat)
                pl.BlockSpec((tile_n * n_nbr, 1), row),     # time ranks (flat)
                pl.BlockSpec((tile_n, 1), row),             # most-recent-neighbor slot
                pl.BlockSpec((dp, dp), full),               # W_dst^T (bf16)
                pl.BlockSpec((n_nbr, 2 * dp), full),        # [te_q | te_k] (bf16)
                pl.BlockSpec((dp, dp), full),               # agg_gate^T top half
                pl.BlockSpec((dp, dp), full),               # agg_gate^T bottom half
            ],
            out_specs=pl.BlockSpec((tile_n, dp), row),
        ),
        compiler_params=pltpu.CompilerParams(
            dimension_semantics=("parallel",),
            vmem_limit_bytes=_vmem_limit_bytes(),
        ),
    )(srch_p, dst_p, idx_flat, ro_flat, last,
      wdst_p, te_p, wg_top, wg_bot)
    return out[:, :d]


def dgsr_forward(params, user_feat, item_feat,
                 item_nbr_idx, item_nbr_time,   # users neighboring each item
                 user_nbr_idx, user_nbr_time):  # items neighboring each user
    # item_reduce_func side: aggregate projected user features into item nodes
    item_out = dgsr_side(user_feat, item_feat, item_nbr_idx, item_nbr_time,
                         params["user_weight_t"], params["item_weight_t"],
                         params["i_time_encoding"], params["i_time_encoding_k"],
                         params["agg_gate_i_t"])
    # user_reduce_func side: aggregate projected item features into user nodes
    user_out = dgsr_side(item_feat, user_feat, user_nbr_idx, user_nbr_time,
                         params["item_weight_t"], params["user_weight_t"],
                         params["u_time_encoding"], params["u_time_encoding_k"],
                         params["agg_gate_u_t"])
    return {"user": user_out, "item": item_out}


# ----------------------------------------------------------------------------
# Pure-JAX reference (mirrors the torch orgat/att/residual forward)
# ----------------------------------------------------------------------------
def _ref_side(src_feat, dst_feat, nbr_idx, nbr_time,
              w_src_t, w_dst_t, te_q_tab, te_k_tab, w_gate_t):
    d = dst_feat.shape[1]
    src_h = src_feat @ w_src_t
    dst_h = dst_feat @ w_dst_t
    nbr = src_h[nbr_idx]
    order = jnp.argsort(jnp.argsort(nbr_time, axis=1), axis=1)
    re_order = nbr_time.shape[1] - order - 1
    teq = te_q_tab[re_order]
    tek = te_k_tab[re_order]
    scale = 1.0 / jnp.sqrt(jnp.float32(d))
    e = jnp.sum((teq + nbr) * dst_h[:, None, :], axis=2) * scale
    alpha = jax.nn.softmax(e, axis=1)
    h_long = jnp.sum(alpha[:, :, None] * (nbr + tek), axis=1)
    last = jnp.argmax(nbr_time, axis=1)
    last_em = jnp.take_along_axis(nbr, last[:, None, None], axis=1)[:, 0, :]
    e1 = jnp.sum(last_em[:, None, :] * nbr, axis=2) * scale
    alpha1 = jax.nn.softmax(e1, axis=1)
    h_short = jnp.sum(alpha1[:, :, None] * nbr, axis=1)
    new_h = jnp.concatenate([h_long, h_short], axis=1) @ w_gate_t
    z = new_h + dst_feat
    return jnp.where(z > 0, z, jnp.expm1(jnp.minimum(z, 0.0)))


# ----------------------------------------------------------------------------
if __name__ == "__main__":
    hidden = 32
    n_users, n_items = 16, 16
    user_max_length = 8   # #user neighbors per item
    item_max_length = 8   # #item neighbors per user

    key = jax.random.PRNGKey(0)
    ks = jax.random.split(key, 14)

    def init(k, shape, scale=0.05):
        return (scale * jax.random.normal(k, shape)).astype(jnp.float32)

    params = {
        # torch Linear weights are (out, in); stored transposed as (in, out)
        "user_weight_t": init(ks[0], (hidden, hidden)),
        "item_weight_t": init(ks[1], (hidden, hidden)),
        "agg_gate_u_t": init(ks[2], (2 * hidden, hidden)),
        "agg_gate_i_t": init(ks[3], (2 * hidden, hidden)),
        "i_time_encoding": init(ks[4], (user_max_length, hidden), 0.1),
        "i_time_encoding_k": init(ks[5], (user_max_length, hidden), 0.1),
        "u_time_encoding": init(ks[6], (item_max_length, hidden), 0.1),
        "u_time_encoding_k": init(ks[7], (item_max_length, hidden), 0.1),
    }

    user_feat = init(ks[8], (n_users, hidden), 1.0)
    item_feat = init(ks[9], (n_items, hidden), 1.0)

    item_nbr_idx = jax.random.randint(ks[10], (n_items, user_max_length),
                                      0, n_users)
    item_nbr_time = jax.random.uniform(ks[11], (n_items, user_max_length),
                                       dtype=jnp.float32)
    user_nbr_idx = jax.random.randint(ks[12], (n_users, item_max_length),
                                      0, n_items)
    user_nbr_time = jax.random.uniform(ks[13], (n_users, item_max_length),
                                       dtype=jnp.float32)

    out = jax.jit(dgsr_forward)(params, user_feat, item_feat,
                                item_nbr_idx, item_nbr_time,
                                user_nbr_idx, user_nbr_time)
    jax.block_until_ready(out)

    assert out["user"].shape == (n_users, hidden)
    assert out["item"].shape == (n_items, hidden)
    assert bool(jnp.all(jnp.isfinite(out["user"])))
    assert bool(jnp.all(jnp.isfinite(out["item"])))

    ref_item = _ref_side(user_feat, item_feat, item_nbr_idx, item_nbr_time,
                         params["user_weight_t"], params["item_weight_t"],
                         params["i_time_encoding"], params["i_time_encoding_k"],
                         params["agg_gate_i_t"])
    ref_user = _ref_side(item_feat, user_feat, user_nbr_idx, user_nbr_time,
                         params["item_weight_t"], params["user_weight_t"],
                         params["u_time_encoding"], params["u_time_encoding_k"],
                         params["agg_gate_u_t"])
    # bf16 MXU operands + approx reciprocals: modest tolerance vs f32 reference.
    assert bool(jnp.allclose(out["item"], ref_item, atol=3e-2, rtol=3e-2))
    assert bool(jnp.allclose(out["user"], ref_user, atol=3e-2, rtol=3e-2))
    print("KERNEL_OK")
</pallas_src>

<mosaic_0001>
module attributes {stable_mosaic.version = 11 : i64} {
  func.func @_dgsr_fused_kernel(%arg0: i32, %arg1: memref<16x128xbf16, #tpu.memory_space<vmem>>, %arg2: memref<8x128xf32, #tpu.memory_space<vmem>>, %arg3: memref<64x1xi32, #tpu.memory_space<vmem>>, %arg4: memref<64x1xi32, #tpu.memory_space<vmem>>, %arg5: memref<8x1xi32, #tpu.memory_space<vmem>>, %arg6: memref<128x128xbf16, #tpu.memory_space<vmem>>, %arg7: memref<8x256xbf16, #tpu.memory_space<vmem>>, %arg8: memref<128x128xbf16, #tpu.memory_space<vmem>>, %arg9: memref<128x128xbf16, #tpu.memory_space<vmem>>, %arg10: memref<8x128xf32, #tpu.memory_space<vmem>>) attributes {dimension_semantics = [#tpu.dimension_semantics<parallel>], iteration_bounds = array<i64: 2>, scalar_prefetch = 0 : i64, scratch_operands = 0 : i64, tpu.core_type = #tpu.core_type<tc>, window_params = [{pipeline_mode = #tpu.pipeline_mode<synchronous>, transform_indices = @transform_0, window_bounds = array<i64: 16, 128>}, {transform_indices = @transform_1, window_bounds = array<i64: 8, 128>}, {transform_indices = @transform_2, window_bounds = array<i64: 64, 1>}, {transform_indices = @transform_3, window_bounds = array<i64: 64, 1>}, {transform_indices = @transform_4, window_bounds = array<i64: 8, 1>}, {pipeline_mode = #tpu.pipeline_mode<synchronous>, transform_indices = @transform_5, window_bounds = array<i64: 128, 128>}, {pipeline_mode = #tpu.pipeline_mode<synchronous>, transform_indices = @transform_6, window_bounds = array<i64: 8, 256>}, {pipeline_mode = #tpu.pipeline_mode<synchronous>, transform_indices = @transform_7, window_bounds = array<i64: 128, 128>}, {pipeline_mode = #tpu.pipeline_mode<synchronous>, transform_indices = @transform_8, window_bounds = array<i64: 128, 128>}, {transform_indices = @transform_9, window_bounds = array<i64: 8, 128>}]} {
    %cst = arith.constant 3.200000e+01 : f32
    %0 = math.sqrt %cst : f32
    %cst_0 = arith.constant 1.000000e+00 : f32
    %1 = arith.divf %cst_0, %0 : f32
    %c0 = arith.constant 0 : index
    %c0_1 = arith.constant 0 : index
    %2 = vector.load %arg2[%c0, %c0_1] : memref<8x128xf32, #tpu.memory_space<vmem>>, vector<8x128xf32>
    %3 = arith.truncf %2 : vector<8x128xf32> to vector<8x128xbf16>
    %c0_2 = arith.constant 0 : index
    %c0_3 = arith.constant 0 : index
    %4 = vector.load %arg6[%c0_2, %c0_3] : memref<128x128xbf16, #tpu.memory_space<vmem>>, vector<128x128xbf16>
    %cst_4 = arith.constant dense<0.000000e+00> : vector<8x128xf32>
    %5 = tpu.matmul %3, %4, %cst_4 {dimension_numbers = #tpu.dot_dimension_numbers<[1], [0], [0], [1], [0, 0, 1, 1], [], []>} : vector<8x128xbf16>, vector<128x128xbf16>, vector<8x128xf32> -> vector<8x128xf32>
    %6 = tpu.iota {dimensions = array<i32: 1>} : vector<64x16xi32>
    %c0_5 = arith.constant 0 : index
    %c0_6 = arith.constant 0 : index
    %7 = vector.load %arg3[%c0_5, %c0_6] : memref<64x1xi32, #tpu.memory_space<vmem>>, vector<64x1xi32>
    %8 = vector.broadcast %7 : vector<64x1xi32> to vector<64x16xi32>
    %9 = arith.cmpi eq, %6, %8 : vector<64x16xi32>
    %10 = arith.extui %9 : vector<64x16xi1> to vector<64x16xi32>
    %11 = arith.sitofp %10 : vector<64x16xi32> to vector<64x16xf32>
    %12 = arith.truncf %11 : vector<64x16xf32> to vector<64x16xbf16>
    %c0_7 = arith.constant 0 : index
    %c0_8 = arith.constant 0 : index
    %13 = vector.load %arg1[%c0_7, %c0_8] : memref<16x128xbf16, #tpu.memory_space<vmem>>, vector<16x128xbf16>
    %cst_9 = arith.constant dense<0.000000e+00> : vector<64x128xf32>
    %14 = tpu.matmul %12, %13, %cst_9 {dimension_numbers = #tpu.dot_dimension_numbers<[1], [0], [0], [1], [0, 0, 1, 1], [], []>} : vector<64x16xbf16>, vector<16x128xbf16>, vector<64x128xf32> -> vector<64x128xf32>
    %15 = vector.shape_cast %14 : vector<64x128xf32> to vector<8x8x128xf32>
    %16 = tpu.iota {dimensions = array<i32: 1>} : vector<64x8xi32>
    %c0_10 = arith.constant 0 : index
    %c0_11 = arith.constant 0 : index
    %17 = vector.load %arg4[%c0_10, %c0_11] : memref<64x1xi32, #tpu.memory_space<vmem>>, vector<64x1xi32>
    %18 = vector.broadcast %17 : vector<64x1xi32> to vector<64x8xi32>
    %19 = arith.cmpi eq, %16, %18 : vector<64x8xi32>
    %20 = arith.extui %19 : vector<64x8xi1> to vector<64x8xi32>
    %21 = arith.sitofp %20 : vector<64x8xi32> to vector<64x8xf32>
    %22 = arith.truncf %21 : vector<64x8xf32> to vector<64x8xbf16>
    %c0_12 = arith.constant 0 : index
    %c0_13 = arith.constant 0 : index
    %23 = vector.load %arg7[%c0_12, %c0_13] : memref<8x256xbf16, #tpu.memory_space<vmem>>, vector<8x256xbf16>
    %cst_14 = arith.constant dense<0.000000e+00> : vector<64x256xf32>
    %24 = tpu.matmul %22, %23, %cst_14 {dimension_numbers = #tpu.dot_dimension_numbers<[1], [0], [0], [1], [0, 0, 1, 1], [], []>} : vector<64x8xbf16>, vector<8x256xbf16>, vector<64x256xf32> -> vector<64x256xf32>
    %25 = vector.shape_cast %24 : vector<64x256xf32> to vector<8x8x256xf32>
    %26 = vector.extract_strided_slice %25 {offsets = [0, 0, 0], sizes = [8, 8, 128], strides = [1, 1, 1]} : vector<8x8x256xf32> to vector<8x8x128xf32>
    %27 = vector.extract_strided_slice %25 {offsets = [0, 0, 128], sizes = [8, 8, 128], strides = [1, 1, 1]} : vector<8x8x256xf32> to vector<8x8x128xf32>
    %28 = arith.addf %26, %15 : vector<8x8x128xf32>
    %29 = vector.shape_cast %5 : vector<8x128xf32> to vector<8x1x128xf32>
    %30 = vector.broadcast %29 : vector<8x1x128xf32> to vector<8x8x128xf32>
    %31 = arith.mulf %28, %30 : vector<8x8x128xf32>
    %cst_15 = arith.constant dense<0.000000e+00> : vector<8x8xf32>
    %32 = vector.multi_reduction <add>, %31, %cst_15 [2] : vector<8x8x128xf32> to vector<8x8xf32>
    %33 = vector.broadcast %1 : f32 to vector<8x8xf32>
    %34 = arith.mulf %32, %33 : vector<8x8xf32>
    %cst_16 = arith.constant dense<0xFF800000> : vector<8xf32>
    %35 = vector.multi_reduction <maximumf>, %34, %cst_16 [1] : vector<8x8xf32> to vector<8xf32>
    %36 = vector.shape_cast %35 : vector<8xf32> to vector<8x1xf32>
    %37 = vector.broadcast %36 : vector<8x1xf32> to vector<8x8xf32>
    %38 = arith.subf %34, %37 : vector<8x8xf32>
    %39 = math.exp %38 : vector<8x8xf32>
    %cst_17 = arith.constant dense<0.000000e+00> : vector<8xf32>
    %40 = vector.multi_reduction <add>, %39, %cst_17 [1] : vector<8x8xf32> to vector<8xf32>
    %41 = vector.shape_cast %40 : vector<8xf32> to vector<8x1xf32>
    %42 = tpu.reciprocal %41 {approx = true} : vector<8x1xf32> -> vector<8x1xf32>
    %43 = vector.broadcast %42 : vector<8x1xf32> to vector<8x8xf32>
    %44 = arith.mulf %39, %43 : vector<8x8xf32>
    %45 = vector.shape_cast %44 : vector<8x8xf32> to vector<8x8x1xf32>
    %46 = arith.addf %15, %27 : vector<8x8x128xf32>
    %47 = vector.broadcast %45 : vector<8x8x1xf32> to vector<8x8x128xf32>
    %48 = arith.mulf %47, %46 : vector<8x8x128xf32>
    %cst_18 = arith.constant dense<0.000000e+00> : vector<8x128xf32>
    %49 = vector.multi_reduction <add>, %48, %cst_18 [1] : vector<8x8x128xf32> to vector<8x128xf32>
    %50 = tpu.iota {dimensions = array<i32: 1>} : vector<8x8xi32>
    %c0_19 = arith.constant 0 : index
    %c0_20 = arith.constant 0 : index
    %51 = vector.load %arg5[%c0_19, %c0_20] : memref<8x1xi32, #tpu.memory_space<vmem>>, vector<8x1xi32>
    %52 = vector.broadcast %51 : vector<8x1xi32> to vector<8x8xi32>
    %53 = arith.cmpi eq, %50, %52 : vector<8x8xi32>
    %54 = arith.extui %53 : vector<8x8xi1> to vector<8x8xi32>
    %55 = arith.sitofp %54 : vector<8x8xi32> to vector<8x8xf32>
    %56 = vector.shape_cast %55 : vector<8x8xf32> to vector<8x8x1xf32>
    %57 = vector.broadcast %56 : vector<8x8x1xf32> to vector<8x8x128xf32>
    %58 = arith.mulf %57, %15 : vector<8x8x128xf32>
    %cst_21 = arith.constant dense<0.000000e+00> : vector<8x128xf32>
    %59 = vector.multi_reduction <add>, %58, %cst_21 [1] : vector<8x8x128xf32> to vector<8x128xf32>
    %60 = vector.shape_cast %59 : vector<8x128xf32> to vector<8x1x128xf32>
    %61 = vector.broadcast %60 : vector<8x1x128xf32> to vector<8x8x128xf32>
    %62 = arith.mulf %61, %15 : vector<8x8x128xf32>
    %cst_22 = arith.constant dense<0.000000e+00> : vector<8x8xf32>
    %63 = vector.multi_reduction <add>, %62, %cst_22 [2] : vector<8x8x128xf32> to vector<8x8xf32>
    %64 = vector.broadcast %1 : f32 to vector<8x8xf32>
    %65 = arith.mulf %63, %64 : vector<8x8xf32>
    %cst_23 = arith.constant dense<0xFF800000> : vector<8xf32>
    %66 = vector.multi_reduction <maximumf>, %65, %cst_23 [1] : vector<8x8xf32> to vector<8xf32>
    %67 = vector.shape_cast %66 : vector<8xf32> to vector<8x1xf32>
    %68 = vector.broadcast %67 : vector<8x1xf32> to vector<8x8xf32>
    %69 = arith.subf %65, %68 : vector<8x8xf32>
    %70 = math.exp %69 : vector<8x8xf32>
    %cst_24 = arith.constant dense<0.000000e+00> : vector<8xf32>
    %71 = vector.multi_reduction <add>, %70, %cst_24 [1] : vector<8x8xf32> to vector<8xf32>
    %72 = vector.shape_cast %71 : vector<8xf32> to vector<8x1xf32>
    %73 = tpu.reciprocal %72 {approx = true} : vector<8x1xf32> -> vector<8x1xf32>
    %74 = vector.broadcast %73 : vector<8x1xf32> to vector<8x8xf32>
    %75 = arith.mulf %70, %74 : vector<8x8xf32>
    %76 = vector.shape_cast %75 : vector<8x8xf32> to vector<8x8x1xf32>
    %77 = vector.broadcast %76 : vector<8x8x1xf32> to vector<8x8x128xf32>
    %78 = arith.mulf %77, %15 : vector<8x8x128xf32>
    %cst_25 = arith.constant dense<0.000000e+00> : vector<8x128xf32>
    %79 = vector.multi_reduction <add>, %78, %cst_25 [1] : vector<8x8x128xf32> to vector<8x128xf32>
    %80 = arith.truncf %49 : vector<8x128xf32> to vector<8x128xbf16>
    %c0_26 = arith.constant 0 : index
    %c0_27 = arith.constant 0 : index
    %81 = vector.load %arg8[%c0_26, %c0_27] : memref<128x128xbf16, #tpu.memory_space<vmem>>, vector<128x128xbf16>
    %cst_28 = arith.constant dense<0.000000e+00> : vector<8x128xf32>
    %82 = tpu.matmul %80, %81, %cst_28 {dimension_numbers = #tpu.dot_dimension_numbers<[1], [0], [0], [1], [0, 0, 1, 1], [], []>} : vector<8x128xbf16>, vector<128x128xbf16>, vector<8x128xf32> -> vector<8x128xf32>
    %83 = arith.truncf %79 : vector<8x128xf32> to vector<8x128xbf16>
    %c0_29 = arith.constant 0 : index
    %c0_30 = arith.constant 0 : index
    %84 = vector.load %arg9[%c0_29, %c0_30] : memref<128x128xbf16, #tpu.memory_space<vmem>>, vector<128x128xbf16>
    %cst_31 = arith.constant dense<0.000000e+00> : vector<8x128xf32>
    %85 = tpu.matmul %83, %84, %cst_31 {dimension_numbers = #tpu.dot_dimension_numbers<[1], [0], [0], [1], [0, 0, 1, 1], [], []>} : vector<8x128xbf16>, vector<128x128xbf16>, vector<8x128xf32> -> vector<8x128xf32>
    %86 = arith.addf %82, %85 : vector<8x128xf32>
    %87 = arith.addf %86, %2 : vector<8x128xf32>
    %cst_32 = arith.constant 0.000000e+00 : f32
    %88 = vector.broadcast %cst_32 : f32 to vector<8x128xf32>
    %89 = arith.cmpf ogt, %87, %88 : vector<8x128xf32>
    %cst_33 = arith.constant 0.000000e+00 : f32
    %90 = vector.broadcast %cst_33 : f32 to vector<8x128xf32>
    %91 = arith.minimumf %87, %90 : vector<8x128xf32>
    %92 = math.exp %91 : vector<8x128xf32>
    %cst_34 = arith.constant 1.000000e+00 : f32
    %93 = vector.broadcast %cst_34 : f32 to vector<8x128xf32>
    %94 = arith.subf %92, %93 : vector<8x128xf32>
    %95 = arith.select %89, %87, %94 : vector<8x128xi1>, vector<8x128xf32>
    %c0_35 = arith.constant 0 : index
    %c0_36 = arith.constant 0 : index
    %96 = vector.load %arg10[%c0_35, %c0_36] : memref<8x128xf32, #tpu.memory_space<vmem>>, vector<8x128xf32>
    tpu.vector_store %arg10[%c0_35, %c0_36], %95 {strides = array<i32>} : memref<8x128xf32, #tpu.memory_space<vmem>>, vector<8x128xf32>,
    return
  }
  func.func @transform_0(%arg0: i32) -> (i32, i32) {
    %c0_i32 = arith.constant 0 : i32
    %c0_i32_0 = arith.constant 0 : i32
    %c0_i32_1 = arith.constant 0 : i32
    return %c0_i32, %c0_i32_0 : i32, i32
  }
  func.func @transform_1(%arg0: i32) -> (i32, i32) {
    %c0_i32 = arith.constant 0 : i32
    %c0_i32_0 = arith.constant 0 : i32
    return %arg0, %c0_i32 : i32, i32
  }
  func.func @transform_2(%arg0: i32) -> (i32, i32) {
    %c0_i32 = arith.constant 0 : i32
    %c0_i32_0 = arith.constant 0 : i32
    return %arg0, %c0_i32 : i32, i32
  }
  func.func @transform_3(%arg0: i32) -> (i32, i32) {
    %c0_i32 = arith.constant 0 : i32
    %c0_i32_0 = arith.constant 0 : i32
    return %arg0, %c0_i32 : i32, i32
  }
  func.func @transform_4(%arg0: i32) -> (i32, i32) {
    %c0_i32 = arith.constant 0 : i32
    %c0_i32_0 = arith.constant 0 : i32
    return %arg0, %c0_i32 : i32, i32
  }
  func.func @transform_5(%arg0: i32) -> (i32, i32) {
    %c0_i32 = arith.constant 0 : i32
    %c0_i32_0 = arith.constant 0 : i32
    %c0_i32_1 = arith.constant 0 : i32
    return %c0_i32, %c0_i32_0 : i32, i32
  }
  func.func @transform_6(%arg0: i32) -> (i32, i32) {
    %c0_i32 = arith.constant 0 : i32
    %c0_i32_0 = arith.constant 0 : i32
    %c0_i32_1 = arith.constant 0 : i32
    return %c0_i32, %c0_i32_0 : i32, i32
  }
  func.func @transform_7(%arg0: i32) -> (i32, i32) {
    %c0_i32 = arith.constant 0 : i32
    %c0_i32_0 = arith.constant 0 : i32
    %c0_i32_1 = arith.constant 0 : i32
    return %c0_i32, %c0_i32_0 : i32, i32
  }
  func.func @transform_8(%arg0: i32) -> (i32, i32) {
    %c0_i32 = arith.constant 0 : i32
    %c0_i32_0 = arith.constant 0 : i32
    %c0_i32_1 = arith.constant 0 : i32
    return %c0_i32, %c0_i32_0 : i32, i32
  }
  func.func @transform_9(%arg0: i32) -> (i32, i32) {
    %c0_i32 = arith.constant 0 : i32
    %c0_i32_0 = arith.constant 0 : i32
    return %arg0, %c0_i32 : i32, i32
  }
}

</mosaic_0001>

<llo_original>
// kernel: dgsr_forward.3
$region0: #{dgsr_forward.3}
  #allocation0 [shape = 'u32[]', space=smem, size = 0x4, offset = 0x4, fixed_abs, tag = 'smem constant byte address 0x4 - core index']
  #allocation1 [shape = 'u32[144,128]{1,0:T(1,128)}', space=vmem, size = 0x12000, scoped, tag = 'internal scratch']
  %s0 = inlined_call_operand.vmem [shape: bf16[16,128], index: 0, kind: input, shape index: {}]
  %s1 = inlined_call_operand.vmem [shape: f32[16,128], index: 1, kind: input, shape index: {}]
  %s2 = inlined_call_operand.vmem [shape: s32[128,1], index: 2, kind: input, shape index: {}]
  %s3 = inlined_call_operand.vmem [shape: s32[128,1], index: 3, kind: input, shape index: {}]
  %s4 = inlined_call_operand.vmem [shape: s32[16,1], index: 4, kind: input, shape index: {}]
  %s5 = inlined_call_operand.vmem [shape: bf16[128,128], index: 5, kind: input, shape index: {}]
  %s6 = inlined_call_operand.vmem [shape: bf16[8,256], index: 6, kind: input, shape index: {}]
  %s7 = inlined_call_operand.vmem [shape: bf16[128,128], index: 7, kind: input, shape index: {}]
  %s8 = inlined_call_operand.vmem [shape: bf16[128,128], index: 8, kind: input, shape index: {}]
  %s9 = inlined_call_operand.hbm [shape: f32[16,128], index: 9, kind: output, shape index: {}]
  %s10 = sld [smem:[#allocation0]]
  $region69: #{dgsr_forward.3} parent=0
    _
  %s12 = ssub.s32 1, %s10
  %s13 = scalar_select 0, %s12, %s10
  $region1: #{dgsr_forward.3} parent=0
    #allocation2 [shape = 'u8[8192]{0}', space=vmem, size = 0x2000, scoped, tag = 'output window, operand 0']
    #allocation3 [shape = 's32[2]{0}', space=sflag, size = 0x8, scoped, tag = 'scoped memory for dgsr_forward.3']
    %14 = vsyncpa [#allocation3], 0
    %s15 = scalar_lea.sflag [#allocation3], 1
    %16 = vsyncpa %s15, 0
    loop: start=0, step=1, limit=4
    $region2: #{dgsr_forward.3} parent=1 // loop_pre_header
      _
    $region3: #{dgsr_forward.3} parent=1 // loop_header
      %s18 = sphi 0, %s22
      %p19 = scmp.ge.s32.totalorder %s18, 4
      %s26 = sphi 0, %s26
      %s28 = sphi 0, %s26
      %s29 = sphi 0, %s28
      %s43 = sphi 0, %s29
      %s49 = sphi 0, %s51
      %s52 = sphi 0, %s49
      %s53 = sphi 0, %s52
      %s69 = sphi 0, %s53
      %s75 = sphi 0, %s77
      %s78 = sphi 0, %s75
      %s79 = sphi 0, %s78
      %s95 = sphi 0, %s79
      %s101 = sphi 0, %s103
      %s104 = sphi 0, %s101
      %s105 = sphi 0, %s104
      %s121 = sphi 0, %s105
      %s127 = sphi 0, %s129
      %s130 = sphi 0, %s127
      %s131 = sphi 0, %s130
      %s147 = sphi 0, %s131
      %s151 = sphi 0, %s151
      %s153 = sphi 0, %s151
      %s154 = sphi 0, %s153
      %s168 = sphi 0, %s154
      %s172 = sphi 0, %s172
      %s174 = sphi 0, %s172
      %s175 = sphi 0, %s174
      %s189 = sphi 0, %s175
      %s193 = sphi 0, %s193
      %s195 = sphi 0, %s193
      %s196 = sphi 0, %s195
      %s210 = sphi 0, %s196
      %s214 = sphi 0, %s214
      %s216 = sphi 0, %s214
      %s217 = sphi 0, %s216
      %s231 = sphi 0, %s217
      %s237 = sphi 0, %s239
      %s240 = sphi 0, %s237
      %s241 = sphi 0, %s240
      %s257 = sphi 0, %s241
    $region4: #{dgsr_forward.3} parent=1 // loop_header_branch
      %21 = sbr.rel (%p19) target = $region8
    $region5: #{dgsr_forward.3} parent=1 // loop_body
      %s23 = ssub.s32 %s18, 1
      %s24 = ssub.s32 %s18, 2
      %s25 = sadd.s32 %s18, 1
      %s27 = sadd.s32 %s26, 1
      %p30 = scmp.eq.s32.totalorder %s18, 1
      %p31 = scmp.ne.s32.totalorder %s26, %s28
      %p32 = scmp.eq.s32.totalorder %s18, 0
      %p33 = por %p31, %p32
      %p34 = scmp.ne.s32.totalorder %s26, %s28
      %p35 = scmp.eq.s32.totalorder %s23, 1
      %p36 = por %p34, %p35
      %p37 = scmp.ne.s32.totalorder %s28, %s29
      %p38 = scmp.eq.s32.totalorder %s23, 0
      %p39 = por %p37, %p38
      %p40 = scmp.ne.s32.totalorder %s28, %s29
      %p41 = scmp.eq.s32.totalorder %s24, 1
      %p42 = por %p40, %p41
      %p44 = scmp.ne.s32.totalorder %s29, %s43
      %p45 = scmp.eq.s32.totalorder %s24, 0
      %p46 = por %p44, %p45
      %s47 = ssub.s32 %s18, %s25
      %p48 = scmp.eq.s32.totalorder %s47, 0
      %s50 = sadd.s32 %s49, 1
      %s51 = scalar_select %p48, %s49, %s50
      %p54 = pneg %p48
      %p55 = scmp.eq.s32.totalorder %s18, 1
      %p56 = por %p54, %p55
      %p57 = scmp.ne.s32.totalorder %s49, %s52
      %p58 = scmp.eq.s32.totalorder %s18, 0
      %p59 = por %p57, %p58
      %p60 = scmp.ne.s32.totalorder %s49, %s52
      %p61 = scmp.eq.s32.totalorder %s23, 1
      %p62 = por %p60, %p61
      %p63 = scmp.ne.s32.totalorder %s52, %s53
      %p64 = scmp.eq.s32.totalorder %s23, 0
      %p65 = por %p63, %p64
      %p66 = scmp.ne.s32.totalorder %s52, %s53
      %p67 = scmp.eq.s32.totalorder %s24, 1
      %p68 = por %p66, %p67
      %p70 = scmp.ne.s32.totalorder %s53, %s69
      %p71 = scmp.eq.s32.totalorder %s24, 0
      %p72 = por %p70, %p71
      %s73 = ssub.s32 %s18, %s25
      %p74 = scmp.eq.s32.totalorder %s73, 0
      %s76 = sadd.s32 %s75, 1
      %s77 = scalar_select %p74, %s75, %s76
      %p80 = pneg %p74
      %p81 = scmp.eq.s32.totalorder %s18, 1
      %p82 = por %p80, %p81
      %p83 = scmp.ne.s32.totalorder %s75, %s78
      %p84 = scmp.eq.s32.totalorder %s18, 0
      %p85 = por %p83, %p84
      %p86 = scmp.ne.s32.totalorder %s75, %s78
      %p87 = scmp.eq.s32.totalorder %s23, 1
      %p88 = por %p86, %p87
      %p89 = scmp.ne.s32.totalorder %s78, %s79
      %p90 = scmp.eq.s32.totalorder %s23, 0
      %p91 = por %p89, %p90
      %p92 = scmp.ne.s32.totalorder %s78, %s79
      %p93 = scmp.eq.s32.totalorder %s24, 1
      %p94 = por %p92, %p93
      %p96 = scmp.ne.s32.totalorder %s79, %s95
      %p97 = scmp.eq.s32.totalorder %s24, 0
      %p98 = por %p96, %p97
      %s99 = ssub.s32 %s18, %s25
      %p100 = scmp.eq.s32.totalorder %s99, 0
      %s102 = sadd.s32 %s101, 1
      %s103 = scalar_select %p100, %s101, %s102
      %p106 = pneg %p100
      %p107 = scmp.eq.s32.totalorder %s18, 1
      %p108 = por %p106, %p107
      %p109 = scmp.ne.s32.totalorder %s101, %s104
      %p110 = scmp.eq.s32.totalorder %s18, 0
      %p111 = por %p109, %p110
      %p112 = scmp.ne.s32.totalorder %s101, %s104
      %p113 = scmp.eq.s32.totalorder %s23, 1
      %p114 = por %p112, %p113
      %p115 = scmp.ne.s32.totalorder %s104, %s105
      %p116 = scmp.eq.s32.totalorder %s23, 0
      %p117 = por %p115, %p116
      %p118 = scmp.ne.s32.totalorder %s104, %s105
      %p119 = scmp.eq.s32.totalorder %s24, 1
      %p120 = por %p118, %p119
      %p122 = scmp.ne.s32.totalorder %s105, %s121
      %p123 = scmp.eq.s32.totalorder %s24, 0
      %p124 = por %p122, %p123
      %s125 = ssub.s32 %s18, %s25
      %p126 = scmp.eq.s32.totalorder %s125, 0
      %s128 = sadd.s32 %s127, 1
      %s129 = scalar_select %p126, %s127, %s128
      %p132 = pneg %p126
      %p133 = scmp.eq.s32.totalorder %s18, 1
      %p134 = por %p132, %p133
      %p135 = scmp.ne.s32.totalorder %s127, %s130
      %p136 = scmp.eq.s32.totalorder %s18, 0
      %p137 = por %p135, %p136
      %p138 = scmp.ne.s32.totalorder %s127, %s130
      %p139 = scmp.eq.s32.totalorder %s23, 1
      %p140 = por %p138, %p139
      %p141 = scmp.ne.s32.totalorder %s130, %s131
      %p142 = scmp.eq.s32.totalorder %s23, 0
      %p143 = por %p141, %p142
      %p144 = scmp.ne.s32.totalorder %s130, %s131
      %p145 = scmp.eq.s32.totalorder %s24, 1
      %p146 = por %p144, %p145
      %p148 = scmp.ne.s32.totalorder %s131, %s147
      %p149 = scmp.eq.s32.totalorder %s24, 0
      %p150 = por %p148, %p149
      %s152 = sadd.s32 %s151, 1
      %p155 = scmp.eq.s32.totalorder %s18, 1
      %p156 = scmp.ne.s32.totalorder %s151, %s153
      %p157 = scmp.eq.s32.totalorder %s18, 0
      %p158 = por %p156, %p157
      %p159 = scmp.ne.s32.totalorder %s151, %s153
      %p160 = scmp.eq.s32.totalorder %s23, 1
      %p161 = por %p159, %p160
      %p162 = scmp.ne.s32.totalorder %s153, %s154
      %p163 = scmp.eq.s32.totalorder %s23, 0
      %p164 = por %p162, %p163
      %p165 = scmp.ne.s32.totalorder %s153, %s154
      %p166 = scmp.eq.s32.totalorder %s24, 1
      %p167 = por %p165, %p166
      %p169 = scmp.ne.s32.totalorder %s154, %s168
      %p170 = scmp.eq.s32.totalorder %s24, 0
      %p171 = por %p169, %p170
      %s173 = sadd.s32 %s172, 1
      %p176 = scmp.eq.s32.totalorder %s18, 1
      %p177 = scmp.ne.s32.totalorder %s172, %s174
      %p178 = scmp.eq.s32.totalorder %s18, 0
      %p179 = por %p177, %p178
      %p180 = scmp.ne.s32.totalorder %s172, %s174
      %p181 = scmp.eq.s32.totalorder %s23, 1
      %p182 = por %p180, %p181
      %p183 = scmp.ne.s32.totalorder %s174, %s175
      %p184 = scmp.eq.s32.totalorder %s23, 0
      %p185 = por %p183, %p184
      %p186 = scmp.ne.s32.totalorder %s174, %s175
      %p187 = scmp.eq.s32.totalorder %s24, 1
      %p188 = por %p186, %p187
      %p190 = scmp.ne.s32.totalorder %s175, %s189
      %p191 = scmp.eq.s32.totalorder %s24, 0
      %p192 = por %p190, %p191
      %s194 = sadd.s32 %s193, 1
      %p197 = scmp.eq.s32.totalorder %s18, 1
      %p198 = scmp.ne.s32.totalorder %s193, %s195
      %p199 = scmp.eq.s32.totalorder %s18, 0
      %p200 = por %p198, %p199
      %p201 = scmp.ne.s32.totalorder %s193, %s195
      %p202 = scmp.eq.s32.totalorder %s23, 1
      %p203 = por %p201, %p202
      %p204 = scmp.ne.s32.totalorder %s195, %s196
      %p205 = scmp.eq.s32.totalorder %s23, 0
      %p206 = por %p204, %p205
      %p207 = scmp.ne.s32.totalorder %s195, %s196
      %p208 = scmp.eq.s32.totalorder %s24, 1
      %p209 = por %p207, %p208
      %p211 = scmp.ne.s32.totalorder %s196, %s210
      %p212 = scmp.eq.s32.totalorder %s24, 0
      %p213 = por %p211, %p212
      %s215 = sadd.s32 %s214, 1
      %p218 = scmp.eq.s32.totalorder %s18, 1
      %p219 = scmp.ne.s32.totalorder %s214, %s216
      %p220 = scmp.eq.s32.totalorder %s18, 0
      %p221 = por %p219, %p220
      %p222 = scmp.ne.s32.totalorder %s214, %s216
      %p223 = scmp.eq.s32.totalorder %s23, 1
      %p224 = por %p222, %p223
      %p225 = scmp.ne.s32.totalorder %s216, %s217
      %p226 = scmp.eq.s32.totalorder %s23, 0
      %p227 = por %p225, %p226
      %p228 = scmp.ne.s32.totalorder %s216, %s217
      %p229 = scmp.eq.s32.totalorder %s24, 1
      %p230 = por %p228, %p229
      %p232 = scmp.ne.s32.totalorder %s217, %s231
      %p233 = scmp.eq.s32.totalorder %s24, 0
      %p234 = por %p232, %p233
      %s235 = ssub.s32 %s18, %s25
      %p236 = scmp.eq.s32.totalorder %s235, 0
      %s238 = sadd.s32 %s237, 1
      %s239 = scalar_select %p236, %s237, %s238
      %p242 = pneg %p236
      %p243 = scmp.eq.s32.totalorder %s18, 1
      %p244 = por %p242, %p243
      %p245 = scmp.ne.s32.totalorder %s237, %s240
      %p246 = scmp.eq.s32.totalorder %s18, 0
      %p247 = por %p245, %p246
      %p248 = scmp.ne.s32.totalorder %s237, %s240
      %p249 = scmp.eq.s32.totalorder %s23, 1
      %p250 = por %p248, %p249
      %p251 = scmp.ne.s32.totalorder %s240, %s241
      %p252 = scmp.eq.s32.totalorder %s23, 0
      %p253 = por %p251, %p252
      %p254 = scmp.ne.s32.totalorder %s240, %s241
      %p255 = scmp.eq.s32.totalorder %s24, 1
      %p256 = por %p254, %p255
      %p258 = scmp.ne.s32.totalorder %s241, %s257
      %p259 = scmp.eq.s32.totalorder %s24, 0
      %p260 = por %p258, %p259
      %p261 = scmp.le.s32.totalorder 1, %s18
      %p262 = scmp.lt.s32.totalorder %s18, 3
      %p263 = pnand %p261, %p262
      %p264 = pneg %p263
      // Predicated region
      $region9: #{dgsr_forward.3} parent=5 // pred_check
        _
      $region10: #{dgsr_forward.3} parent=5 // pred_check_branch
        %266 = sbr.rel (%p263) target = $region12
      $region11: #{dgsr_forward.3} parent=5 // pred_region
        %s267 = ssub.s32 %s18, 1
        // Predicated region
        $region13: #{dgsr_forward.3} parent=11 // pred_check
          %p268 = pneg %p39
        $region14: #{dgsr_forward.3} parent=11 // pred_check_branch
          %270 = sbr.rel (%p268) target = $region16
        $region15: #{dgsr_forward.3} parent=11 // pred_region
          _
        $region16: #{dgsr_forward.3} parent=11 // pred_fallthru
          _
        // Predicated region
        $region17: #{dgsr_forward.3} parent=11 // pred_check
          %p271 = pneg %p164
        $region18: #{dgsr_forward.3} parent=11 // pred_check_branch
          %273 = sbr.rel (%p271) target = $region20
        $region19: #{dgsr_forward.3} parent=11 // pred_region
          _
        $region20: #{dgsr_forward.3} parent=11 // pred_fallthru
          _
        // Predicated region
        $region21: #{dgsr_forward.3} parent=11 // pred_check
          %p274 = pneg %p185
        $region22: #{dgsr_forward.3} parent=11 // pred_check_branch
          %276 = sbr.rel (%p274) target = $region24
        $region23: #{dgsr_forward.3} parent=11 // pred_region
          _
        $region24: #{dgsr_forward.3} parent=11 // pred_fallthru
          _
        // Predicated region
        $region25: #{dgsr_forward.3} parent=11 // pred_check
          %p277 = pneg %p206
        $region26: #{dgsr_forward.3} parent=11 // pred_check_branch
          %279 = sbr.rel (%p277) target = $region28
        $region27: #{dgsr_forward.3} parent=11 // pred_region
          _
        $region28: #{dgsr_forward.3} parent=11 // pred_fallthru
          _
        // Predicated region
        $region29: #{dgsr_forward.3} parent=11 // pred_check
          %p280 = pneg %p227
        $region30: #{dgsr_forward.3} parent=11 // pred_check_branch
          %282 = sbr.rel (%p280) target = $region32
        $region31: #{dgsr_forward.3} parent=11 // pred_region
          _
        $region32: #{dgsr_forward.3} parent=11 // pred_fallthru
          _
      $region12: #{dgsr_forward.3} parent=5 // pred_fallthru
        _
      %p283 = scmp.lt.s32.totalorder %s18, 2
      // Predicated region
      $region33: #{dgsr_forward.3} parent=5 // pred_check
        %p284 = pneg %p283
      $region34: #{dgsr_forward.3} parent=5 // pred_check_branch
        %286 = sbr.rel (%p284) target = $region36
      $region35: #{dgsr_forward.3} parent=5 // pred_region
        // Predicated region
        $region37: #{dgsr_forward.3} parent=35 // pred_check
          %p287 = pneg %p59
        $region38: #{dgsr_forward.3} parent=35 // pred_check_branch
          %289 = sbr.rel (%p287) target = $region40
        $region39: #{dgsr_forward.3} parent=35 // pred_region
          %p290 = scmp.lt.s32.totalorder %s18, 1
          %s291 = scalar_select %p290, %s18, 1
          %s292 = smul.addr %s291, 8
          %s293 = scalar_lea.vmem %s1, %s292
        $region40: #{dgsr_forward.3} parent=35 // pred_fallthru
          _
        // Predicated region
        $region41: #{dgsr_forward.3} parent=35 // pred_check
          %p294 = pneg %p85
        $region42: #{dgsr_forward.3} parent=35 // pred_check_branch
          %296 = sbr.rel (%p294) target = $region44
        $region43: #{dgsr_forward.3} parent=35 // pred_region
          %s297 = smul.u32 8, %s18
          %p298 = scmp.lt.s32.totalorder %s297, 15
          %s299 = scalar_select %p298, %s297, 15
          %s300 = smul.addr %s299, 8
          %s301 = scalar_lea.vmem %s2, %s300
          %s302 = smul.u32 8, %s18
        $region44: #{dgsr_forward.3} parent=35 // pred_fallthru
          _
        // Predicated region
        $region45: #{dgsr_forward.3} parent=35 // pred_check
          %p303 = pneg %p111
        $region46: #{dgsr_forward.3} parent=35 // pred_check_branch
          %305 = sbr.rel (%p303) target = $region48
        $region47: #{dgsr_forward.3} parent=35 // pred_region
          %s306 = smul.u32 8, %s18
          %p307 = scmp.lt.s32.totalorder %s306, 15
          %s308 = scalar_select %p307, %s306, 15
          %s309 = smul.addr %s308, 8
          %s310 = scalar_lea.vmem %s3, %s309
          %s311 = smul.u32 8, %s18
        $region48: #{dgsr_forward.3} parent=35 // pred_fallthru
          _
        // Predicated region
        $region49: #{dgsr_forward.3} parent=35 // pred_check
          %p312 = pneg %p137
        $region50: #{dgsr_forward.3} parent=35 // pred_check_branch
          %314 = sbr.rel (%p312) target = $region52
        $region51: #{dgsr_forward.3} parent=35 // pred_region
          %p315 = scmp.lt.s32.totalorder %s18, 1
          %s316 = scalar_select %p315, %s18, 1
          %s317 = smul.addr %s316, 8
          %s318 = scalar_lea.vmem %s4, %s317
        $region52: #{dgsr_forward.3} parent=35 // pred_fallthru
          _
      $region36: #{dgsr_forward.3} parent=5 // pred_fallthru
        _
      %p319 = scmp.le.s32.totalorder 1, %s18
      %p320 = scmp.lt.s32.totalorder %s18, 3
      %p321 = pnand %p319, %p320
      %p322 = pneg %p321
      // Predicated region
      $region53: #{dgsr_forward.3} parent=5 // pred_check
        _
      $region54: #{dgsr_forward.3} parent=5 // pred_check_branch
        %324 = sbr.rel (%p321) target = $region56
      $region55: #{dgsr_forward.3} parent=5 // pred_region
        %s325 = ssub.s32 %s18, 1
        %p326 = pneg %p39
        %p327 = pneg %p36
        %p328 = scmp.lt.s32.totalorder %s23, 1
        %s329 = scalar_select %p328, %s23, 1
        %s330 = smul.addr %s329, 8
        %s331 = scalar_lea.vmem %s1, %s330
        %p332 = pneg %p65
        %p333 = pneg %p62
        %s334 = smul.u32 8, %s23
        %p335 = scmp.lt.s32.totalorder %s334, 15
        %s336 = scalar_select %p335, %s334, 15
        %s337 = smul.addr %s336, 8
        %s338 = scalar_lea.vmem %s2, %s337
        %p339 = pneg %p91
        %p340 = pneg %p88
        %s341 = smul.u32 8, %s23
        %p342 = scmp.lt.s32.totalorder %s341, 15
        %s343 = scalar_select %p342, %s341, 15
        %s344 = smul.addr %s343, 8
        %s345 = scalar_lea.vmem %s3, %s344
        %p346 = pneg %p117
        %p347 = pneg %p114
        %p348 = scmp.lt.s32.totalorder %s23, 1
        %s349 = scalar_select %p348, %s23, 1
        %s350 = smul.addr %s349, 8
        %s351 = scalar_lea.vmem %s4, %s350
        %p352 = pneg %p143
        %p353 = pneg %p140
        %p354 = pneg %p164
        %p355 = pneg %p161
        %p356 = pneg %p185
        %p357 = pneg %p182
        %p358 = pneg %p206
        %p359 = pneg %p203
        %p360 = pneg %p227
        %p361 = pneg %p224
        %p362 = pneg %p253
        %p363 = pneg %p250
        %s364 = sand.u32 %s240, 1
        %s365 = scalar_lea.sflag [#allocation3], %s364
        %s366 = sand.u32 %s240, 1
        %s367 = smul.addr %s366, 8
        %s368 = scalar_lea.vmem [#allocation2], %s367
        %p369 = scmp.lt.s32.totalorder %s23, 1
        %s370 = scalar_select %p369, %s23, 1
        %s371 = smul.addr %s370, 8
        %s372 = scalar_lea.vmem %s1, %s371
        %s373 = smul.u32 8, %s23
        %p374 = scmp.lt.s32.totalorder %s373, 15
        %s375 = scalar_select %p374, %s373, 15
        %s376 = smul.addr %s375, 8
        %s377 = scalar_lea.vmem %s2, %s376
        %s378 = smul.u32 8, %s23
        %s379 = smul.u32 8, %s23
        %p380 = scmp.lt.s32.totalorder %s379, 15
        %s381 = scalar_select %p380, %s379, 15
        %s382 = smul.addr %s381, 8
        %s383 = scalar_lea.vmem %s3, %s382
        %s384 = smul.u32 8, %s23
        %p385 = scmp.lt.s32.totalorder %s23, 1
        %s386 = scalar_select %p385, %s23, 1
        %s387 = smul.addr %s386, 8
        %s388 = scalar_lea.vmem %s4, %s387
        %v390 = vld [vmem:[%s372] sm:$0xff]
        %v391 = vpack.c.bf16 %v390, %v390
        %v392 = vld [vmem:[%s5] sm:$0xf]
        %v393 = vld [vmem:[%s5 + $0x4] sm:$0xf]
        %v394 = vld [vmem:[%s5 + $0x8] sm:$0xf]
        %v395 = vld [vmem:[%s5 + $0xc] sm:$0xf]
        %v396 = vld [vmem:[%s5 + $0x10] sm:$0xf]
        %v397 = vld [vmem:[%s5 + $0x14] sm:$0xf]
        %v398 = vld [vmem:[%s5 + $0x18] sm:$0xf]
        %v399 = vld [vmem:[%s5 + $0x1c] sm:$0xf]
        %v400 = vld [vmem:[%s5 + $0x20] sm:$0xf]
        %v401 = vld [vmem:[%s5 + $0x24] sm:$0xf]
        %v402 = vld [vmem:[%s5 + $0x28] sm:$0xf]
        %v403 = vld [vmem:[%s5 + $0x2c] sm:$0xf]
        %v404 = vld [vmem:[%s5 + $0x30] sm:$0xf]
        %v405 = vld [vmem:[%s5 + $0x34] sm:$0xf]
        %v406 = vld [vmem:[%s5 + $0x38] sm:$0xf]
        %v407 = vld [vmem:[%s5 + $0x3c] sm:$0xf]
        %v424 = vunpack.c.l.b16 %v392
        %v425 = vunpack.c.l.b16 %v393
        %v426 = vunpack.c.l.b16 %v394
        %v427 = vunpack.c.l.b16 %v395
        %v428 = vunpack.c.l.b16 %v396
        %v429 = vunpack.c.l.b16 %v397
        %v430 = vunpack.c.l.b16 %v398
        %v431 = vunpack.c.l.b16 %v399
        %v432 = vunpack.c.l.b16 %v400
        %v433 = vunpack.c.l.b16 %v401
        %v434 = vunpack.c.l.b16 %v402
        %v435 = vunpack.c.l.b16 %v403
        %v436 = vunpack.c.l.b16 %v404
        %v437 = vunpack.c.l.b16 %v405
        %v438 = vunpack.c.l.b16 %v406
        %v439 = vunpack.c.l.b16 %v407
        %v440 = vpack.c.b16 %v425, %v424
        %v441 = vpack.c.b16 %v427, %v426
        %v442 = vpack.c.b16 %v429, %v428
        %v443 = vpack.c.b16 %v431, %v430
        %v444 = vpack.c.b16 %v433, %v432
        %v445 = vpack.c.b16 %v435, %v434
        %v446 = vpack.c.b16 %v437, %v436
        %v447 = vpack.c.b16 %v439, %v438
        %456 = vmatprep.subr.bf16.mxu0 0
        %457 = vmatpush1.bf16.msra.mxu0 %v440
        %458 = vmatprep.subr.bf16.mxu0 0
        %459 = vmatpush1.bf16.msra.mxu0 %v441
        %460 = vmatprep.subr.bf16.mxu0 0
        %461 = vmatpush1.bf16.msra.mxu0 %v442
        %462 = vmatprep.subr.bf16.mxu0 0
        %463 = vmatpush1.bf16.msra.mxu0 %v443
        %464 = vmatprep.subr.bf16.mxu0 0
        %465 = vmatpush1.bf16.msra.mxu0 %v444
        %466 = vmatprep.subr.bf16.mxu0 0
        %467 = vmatpush1.bf16.msra.mxu0 %v445
        %468 = vmatprep.subr.bf16.mxu0 0
        %469 = vmatpush1.bf16.msra.mxu0 %v446
        %470 = vmatprep.subr.bf16.mxu0 0
        %471 = vmatpush1.bf16.msra.mxu0 %v447
        %472 = vmatprep.subr.bf16.mxu0 0
        %473 = vmatpush1.bf16.msra.mxu0 0
        %474 = vmatprep.subr.bf16.mxu0 0
        %475 = vmatpush1.bf16.msra.mxu0 0
        %476 = vmatprep.subr.bf16.mxu0 0
        %477 = vmatpush1.bf16.msra.mxu0 0
        %478 = vmatprep.subr.bf16.mxu0 0
        %479 = vmatpush1.bf16.msra.mxu0 0
        %480 = vmatprep.subr.bf16.mxu0 0
        %481 = vmatpush1.bf16.msra.mxu0 0
        %482 = vmatprep.subr.bf16.mxu0 0
        %483 = vmatpush1.bf16.msra.mxu0 0
        %484 = vmatprep.subr.bf16.mxu0 0
        %485 = vmatpush1.bf16.msra.mxu0 0
        %486 = vmatprep.subr.bf16.mxu0 0
        %487 = vmatpush1.bf16.msra.mxu0 0
        %488 = vmatprep.mubr.bf16.mxu0 0
        %489 = vmatmul.mubr.bf16.gmra.mrb[0].mxu0 %v391
        %v490 = vpop.f32.mrb[0].mxu0
        %v491 = vadd.f32 0.0, %v490
        %v492 = vpop.f32.mrb[0].mxu0
        %v493 = vpop.f32.mrb[0].mxu0
        %v494 = vpop.f32.mrb[0].mxu0
        %495 = vdwg.mxu0
        %v496 = vlaneseq
        %v497 = vand.u32 %v496, 127
        %v498 = vld [vmem:[%s377] sm:$0xff]
        %v499 = vld [vmem:[%s377 + $0x8] sm:$0xff]
        %v500 = vld [vmem:[%s377 + $0x10] sm:$0xff]
        %v501 = vld [vmem:[%s377 + $0x18] sm:$0xff]
        %v502 = vld [vmem:[%s377 + $0x20] sm:$0xff]
        %v503 = vld [vmem:[%s377 + $0x28] sm:$0xff]
        %v504 = vld [vmem:[%s377 + $0x30] sm:$0xff]
        %v505 = vld [vmem:[%s377 + $0x38] sm:$0xff]
        %506 = vset.pattern.permute.xlu0 0
        %507 = vperm.xlu0 %506, %v498
        %v508 = vpop.permute.xlu0 %507
        %509 = vset.pattern.permute.xlu0 0
        %510 = vperm.xlu0 %509, %v499
        %v511 = vpop.permute.xlu0 %510
        %512 = vset.pattern.permute.xlu0 0
        %513 = vperm.xlu0 %512, %v500
        %v514 = vpop.permute.xlu0 %513
        %515 = vset.pattern.permute.xlu0 0
        %516 = vperm.xlu0 %515, %v501
        %v517 = vpop.permute.xlu0 %516
        %518 = vset.pattern.permute.xlu0 0
        %519 = vperm.xlu0 %518, %v502
        %v520 = vpop.permute.xlu0 %519
        %521 = vset.pattern.permute.xlu0 0
        %522 = vperm.xlu0 %521, %v503
        %v523 = vpop.permute.xlu0 %522
        %524 = vset.pattern.permute.xlu0 0
        %525 = vperm.xlu0 %524, %v504
        %v526 = vpop.permute.xlu0 %525
        %527 = vset.pattern.permute.xlu0 0
        %528 = vperm.xlu0 %527, %v505
        %v529 = vpop.permute.xlu0 %528
        %vm530 = vcmp.eq.s32.totalorder %v497, %v508
        %vm531 = vcmp.eq.s32.totalorder %v497, %v511
        %vm532 = vcmp.eq.s32.totalorder %v497, %v514
        %vm533 = vcmp.eq.s32.totalorder %v497, %v517
        %vm534 = vcmp.eq.s32.totalorder %v497, %v520
        %vm535 = vcmp.eq.s32.totalorder %v497, %v523
        %vm536 = vcmp.eq.s32.totalorder %v497, %v526
        %vm537 = vcmp.eq.s32.totalorder %v497, %v529
        %v538 = vsel %vm530, 1, 0
        %v539 = vsel %vm531, 1, 0
        %v540 = vsel %vm532, 1, 0
        %v541 = vsel %vm533, 1, 0
        %v542 = vsel %vm534, 1, 0
        %v543 = vsel %vm535, 1, 0
        %v544 = vsel %vm536, 1, 0
        %v545 = vsel %vm537, 1, 0
        %v546 = vcvt.s32.f32 %v538
        %v547 = vcvt.s32.f32 %v539
        %v548 = vcvt.s32.f32 %v540
        %v549 = vcvt.s32.f32 %v541
        %v550 = vcvt.s32.f32 %v542
        %v551 = vcvt.s32.f32 %v543
        %v552 = vcvt.s32.f32 %v544
        %v553 = vcvt.s32.f32 %v545
        %v554 = vpack.c.bf16 %v547, %v546
        %v555 = vpack.c.bf16 %v549, %v548
        %v556 = vpack.c.bf16 %v551, %v550
        %v557 = vpack.c.bf16 %v553, %v552
        %v558 = vld [vmem:[%s0] sm:$0xf]
        %v559 = vld [vmem:[%s0 + $0x4] sm:$0xf]
        %v562 = vunpack.c.l.b16 %v558
        %v563 = vunpack.c.l.b16 %v559
        %v564 = vpack.c.b16 %v563, %v562
        %vm566 = vcmask 130048
        %v568 = vsel %vm566, %v554, 0
        %v571 = vsel %vm566, %v555, 0
        %v574 = vsel %vm566, %v556, 0
        %v577 = vsel %vm566, %v557, 0
        %579 = vmatprep.subr.bf16.mxu0 0
        %580 = vmatpush1.bf16.msra.mxu0 %v564
        %581 = vmatprep.subr.bf16.mxu0 0
        %582 = vmatpush1.bf16.msra.mxu0 0
        %583 = vmatprep.subr.bf16.mxu0 0
        %584 = vmatpush1.bf16.msra.mxu0 0
        %585 = vmatprep.subr.bf16.mxu0 0
        %586 = vmatpush1.bf16.msra.mxu0 0
        %587 = vmatprep.subr.bf16.mxu0 0
        %588 = vmatpush1.bf16.msra.mxu0 0
        %589 = vmatprep.subr.bf16.mxu0 0
        %590 = vmatpush1.bf16.msra.mxu0 0
        %591 = vmatprep.subr.bf16.mxu0 0
        %592 = vmatpush1.bf16.msra.mxu0 0
        %593 = vmatprep.subr.bf16.mxu0 0
        %594 = vmatpush1.bf16.msra.mxu0 0
        %595 = vmatprep.subr.bf16.mxu0 0
        %596 = vmatpush1.bf16.msra.mxu0 0
        %597 = vmatprep.subr.bf16.mxu0 0
        %598 = vmatpush1.bf16.msra.mxu0 0
        %599 = vmatprep.subr.bf16.mxu0 0
        %600 = vmatpush1.bf16.msra.mxu0 0
        %601 = vmatprep.subr.bf16.mxu0 0
        %602 = vmatpush1.bf16.msra.mxu0 0
        %603 = vmatprep.subr.bf16.mxu0 0
        %604 = vmatpush1.bf16.msra.mxu0 0
        %605 = vmatprep.subr.bf16.mxu0 0
        %606 = vmatpush1.bf16.msra.mxu0 0
        %607 = vmatprep.subr.bf16.mxu0 0
        %608 = vmatpush1.bf16.msra.mxu0 0
        %609 = vmatprep.subr.bf16.mxu0 0
        %610 = vmatpush1.bf16.msra.mxu0 0
        %611 = vmatprep.mubr.bf16.mxu0 0
        %612 = vmatmul.mubr.bf16.gmra.mrb[0].mxu0 %v568
        %v613 = vpop.f32.mrb[0].mxu0
        %v614 = vadd.f32 0.0, %v613
        %v615 = vpop.f32.mrb[0].mxu0
        %v616 = vpop.f32.mrb[0].mxu0
        %v617 = vadd.f32 0.0, %v616
        %v618 = vpop.f32.mrb[0].mxu0
        %619 = vmatprep.mubr.bf16.mxu0 0
        %620 = vmatmul.mubr.bf16.gmra.mrb[0].mxu0 %v571
        %v621 = vpop.f32.mrb[0].mxu0
        %v622 = vadd.f32 0.0, %v621
        %v623 = vpop.f32.mrb[0].mxu0
        %v624 = vpop.f32.mrb[0].mxu0
        %v625 = vadd.f32 0.0, %v624
        %v626 = vpop.f32.mrb[0].mxu0
        %627 = vmatprep.mubr.bf16.mxu0 0
        %628 = vmatmul.mubr.bf16.gmra.mrb[0].mxu0 %v574
        %v629 = vpop.f32.mrb[0].mxu0
        %v630 = vadd.f32 0.0, %v629
        %v631 = vpop.f32.mrb[0].mxu0
        %v632 = vpop.f32.mrb[0].mxu0
        %v633 = vadd.f32 0.0, %v632
        %v634 = vpop.f32.mrb[0].mxu0
        %635 = vmatprep.mubr.bf16.mxu0 0
        %636 = vmatmul.mubr.bf16.gmra.mrb[0].mxu0 %v577
        %v637 = vpop.f32.mrb[0].mxu0
        %v638 = vadd.f32 0.0, %v637
        %v639 = vpop.f32.mrb[0].mxu0
        %v640 = vpop.f32.mrb[0].mxu0
        %v641 = vadd.f32 0.0, %v640
        %v642 = vpop.f32.mrb[0].mxu0
        %643 = vdwg.mxu0
        %v644 = vld [vmem:[%s383] sm:$0xff]
        %v645 = vld [vmem:[%s383 + $0x8] sm:$0xff]
        %v646 = vld [vmem:[%s383 + $0x10] sm:$0xff]
        %v647 = vld [vmem:[%s383 + $0x18] sm:$0xff]
        %v648 = vld [vmem:[%s383 + $0x20] sm:$0xff]
        %v649 = vld [vmem:[%s383 + $0x28] sm:$0xff]
        %v650 = vld [vmem:[%s383 + $0x30] sm:$0xff]
        %v651 = vld [vmem:[%s383 + $0x38] sm:$0xff]
        %652 = vset.pattern.permute.xlu0 0
        %653 = vperm.xlu0 %652, %v644
        %v654 = vpop.permute.xlu0 %653
        %655 = vset.pattern.permute.xlu0 0
        %656 = vperm.xlu0 %655, %v645
        %v657 = vpop.permute.xlu0 %656
        %658 = vset.pattern.permute.xlu0 0
        %659 = vperm.xlu0 %658, %v646
        %v660 = vpop.permute.xlu0 %659
        %661 = vset.pattern.permute.xlu0 0
        %662 = vperm.xlu0 %661, %v647
        %v663 = vpop.permute.xlu0 %662
        %664 = vset.pattern.permute.xlu0 0
        %665 = vperm.xlu0 %664, %v648
        %v666 = vpop.permute.xlu0 %665
        %667 = vset.pattern.permute.xlu0 0
        %668 = vperm.xlu0 %667, %v649
        %v669 = vpop.permute.xlu0 %668
        %670 = vset.pattern.permute.xlu0 0
        %671 = vperm.xlu0 %670, %v650
        %v672 = vpop.permute.xlu0 %671
        %673 = vset.pattern.permute.xlu0 0
        %674 = vperm.xlu0 %673, %v651
        %v675 = vpop.permute.xlu0 %674
        %vm676 = vcmp.eq.s32.totalorder %v497, %v654
        %vm677 = vcmp.eq.s32.totalorder %v497, %v657
        %vm678 = vcmp.eq.s32.totalorder %v497, %v660
        %vm679 = vcmp.eq.s32.totalorder %v497, %v663
        %vm680 = vcmp.eq.s32.totalorder %v497, %v666
        %vm681 = vcmp.eq.s32.totalorder %v497, %v669
        %vm682 = vcmp.eq.s32.totalorder %v497, %v672
        %vm683 = vcmp.eq.s32.totalorder %v497, %v675
        %v684 = vsel %vm676, 1, 0
        %v685 = vsel %vm677, 1, 0
        %v686 = vsel %vm678, 1, 0
        %v687 = vsel %vm679, 1, 0
        %v688 = vsel %vm680, 1, 0
        %v689 = vsel %vm681, 1, 0
        %v690 = vsel %vm682, 1, 0
        %v691 = vsel %vm683, 1, 0
        %v692 = vcvt.s32.f32 %v684
        %v693 = vcvt.s32.f32 %v685
        %v694 = vcvt.s32.f32 %v686
        %v695 = vcvt.s32.f32 %v687
        %v696 = vcvt.s32.f32 %v688
        %v697 = vcvt.s32.f32 %v689
        %v698 = vcvt.s32.f32 %v690
        %v699 = vcvt.s32.f32 %v691
        %v700 = vpack.c.bf16 %v693, %v692
        %v701 = vpack.c.bf16 %v695, %v694
        %v702 = vpack.c.bf16 %v697, %v696
        %v703 = vpack.c.bf16 %v699, %v698
        %v704 = vld [vmem:[%s6] sm:$0xff]
        %v706 = vunpack.c.l.b16 %v704
        %v707 = vunpack.c.h.b16 %v704
        %v708 = vpack.c.b16 %v706, %v706
        %v709 = vpack.c.b16 %v707, %v707
        %vm710 = vcmask 64512
        %v712 = vsel %vm710, %v700, 0
        %v715 = vsel %vm710, %v701, 0
        %v718 = vsel %vm710, %v702, 0
        %v721 = vsel %vm710, %v703, 0
        %vm723 = vcmask 1043456
        %v725 = vsel %vm723, %v708, 0
        %v728 = vsel %vm723, %v709, 0
        %730 = vmatprep.subr.bf16.mxu0 %v728
        %731 = vmatpush1.bf16.msra.mxu0 %v725
        %732 = vmatprep.subr.bf16.mxu0 0
        %733 = vmatpush1.bf16.msra.mxu0 0
        %734 = vmatprep.subr.bf16.mxu0 0
        %735 = vmatpush1.bf16.msra.mxu0 0
        %736 = vmatprep.subr.bf16.mxu0 0
        %737 = vmatpush1.bf16.msra.mxu0 0
        %738 = vmatprep.subr.bf16.mxu0 0
        %739 = vmatpush1.bf16.msra.mxu0 0
        %740 = vmatprep.subr.bf16.mxu0 0
        %741 = vmatpush1.bf16.msra.mxu0 0
        %742 = vmatprep.subr.bf16.mxu0 0
        %743 = vmatpush1.bf16.msra.mxu0 0
        %744 = vmatprep.subr.bf16.mxu0 0
        %745 = vmatpush1.bf16.msra.mxu0 0
        %746 = vmatprep.subr.bf16.mxu0 0
        %747 = vmatpush1.bf16.msra.mxu0 0
        %748 = vmatprep.subr.bf16.mxu0 0
        %749 = vmatpush1.bf16.msra.mxu0 0
        %750 = vmatprep.subr.bf16.mxu0 0
        %751 = vmatpush1.bf16.msra.mxu0 0
        %752 = vmatprep.subr.bf16.mxu0 0
        %753 = vmatpush1.bf16.msra.mxu0 0
        %754 = vmatprep.subr.bf16.mxu0 0
        %755 = vmatpush1.bf16.msra.mxu0 0
        %756 = vmatprep.subr.bf16.mxu0 0
        %757 = vmatpush1.bf16.msra.mxu0 0
        %758 = vmatprep.subr.bf16.mxu0 0
        %759 = vmatpush1.bf16.msra.mxu0 0
        %760 = vmatprep.subr.bf16.mxu0 0
        %761 = vmatpush1.bf16.msra.mxu0 0
        %762 = vmatprep.mubr.bf16.mxu0 0
        %763 = vmatmul.mubr.bf16.gmra.mrb[0].mxu0 %v712
        %v764 = vpop.f32.mrb[0].mxu0
        %v765 = vadd.f32 0.0, %v764
        %v766 = vpop.f32.mrb[0].mxu0
        %v767 = vadd.f32 0.0, %v766
        %v768 = vpop.f32.mrb[0].mxu0
        %v769 = vadd.f32 0.0, %v768
        %v770 = vpop.f32.mrb[0].mxu0
        %v771 = vadd.f32 0.0, %v770
        %772 = vmatprep.mubr.bf16.mxu0 0
        %773 = vmatmul.mubr.bf16.gmra.mrb[0].mxu0 %v715
        %v774 = vpop.f32.mrb[0].mxu0
        %v775 = vadd.f32 0.0, %v774
        %v776 = vpop.f32.mrb[0].mxu0
        %v777 = vadd.f32 0.0, %v776
        %v778 = vpop.f32.mrb[0].mxu0
        %v779 = vadd.f32 0.0, %v778
        %v780 = vpop.f32.mrb[0].mxu0
        %v781 = vadd.f32 0.0, %v780
        %782 = vmatprep.mubr.bf16.mxu0 0
        %783 = vmatmul.mubr.bf16.gmra.mrb[0].mxu0 %v718
        %v784 = vpop.f32.mrb[0].mxu0
        %v785 = vadd.f32 0.0, %v784
        %v786 = vpop.f32.mrb[0].mxu0
        %v787 = vadd.f32 0.0, %v786
        %v788 = vpop.f32.mrb[0].mxu0
        %v789 = vadd.f32 0.0, %v788
        %v790 = vpop.f32.mrb[0].mxu0
        %v791 = vadd.f32 0.0, %v790
        %792 = vmatprep.mubr.bf16.mxu0 0
        %793 = vmatmul.mubr.bf16.gmra.mrb[0].mxu0 %v721
        %v794 = vpop.f32.mrb[0].mxu0
        %v795 = vadd.f32 0.0, %v794
        %v796 = vpop.f32.mrb[0].mxu0
        %v797 = vadd.f32 0.0, %v796
        %v798 = vpop.f32.mrb[0].mxu0
        %v799 = vadd.f32 0.0, %v798
        %v800 = vpop.f32.mrb[0].mxu0
        %v801 = vadd.f32 0.0, %v800
        %802 = vdwg.mxu0
        %v803 = vadd.f32 %v765, %v614
        %v804 = vadd.f32 %v769, %v617
        %v805 = vadd.f32 %v775, %v622
        %v806 = vadd.f32 %v779, %v625
        %v807 = vadd.f32 %v785, %v630
        %v808 = vadd.f32 %v789, %v633
        %v809 = vadd.f32 %v795, %v638
        %v810 = vadd.f32 %v799, %v641
        %v812 = vcombine.high %v491, %v491
        %v814 = vunpack.c.l.s4 1966171168
        %v815 = vunpack.c.0.s8 %v814
        %v816 = vlaneseq
        %v817 = vshrl.u32 %v816, 7
        %v818 = vsub.s32 %v815, %v817
        %v819 = vrot.slane %v491, %v818
        %v821 = vunpack.c.l.s4 1966171168
        %v822 = vunpack.c.0.s8 %v821
        %v823 = vlaneseq
        %v824 = vshrl.u32 %v823, 7
        %v825 = vsub.s32 %v822, %v824
        %v826 = vrot.slane %v812, %v825
        %v827 = vcombine.high %v819, %v819
        %v828 = vcombine.high %v826, %v826
        %v830 = vunpack.c.l.s4 1966171168
        %v831 = vunpack.c.0.s8 %v830
        %v832 = vlaneseq
        %v833 = vshrl.u32 %v832, 7
        %v834 = vsub.s32 %v831, %v833
        %v835 = vrot.slane %v819, %v834
        %v837 = vunpack.c.l.s4 1966171168
        %v838 = vunpack.c.0.s8 %v837
        %v839 = vlaneseq
        %v840 = vshrl.u32 %v839, 7
        %v841 = vsub.s32 %v838, %v840
        %v842 = vrot.slane %v826, %v841
        %v844 = vunpack.c.l.s4 1966171168
        %v845 = vunpack.c.0.s8 %v844
        %v846 = vlaneseq
        %v847 = vshrl.u32 %v846, 7
        %v848 = vsub.s32 %v845, %v847
        %v849 = vrot.slane %v827, %v848
        %v851 = vunpack.c.l.s4 1966171168
        %v852 = vunpack.c.0.s8 %v851
        %v853 = vlaneseq
        %v854 = vshrl.u32 %v853, 7
        %v855 = vsub.s32 %v852, %v854
        %v856 = vrot.slane %v828, %v855
        %v857 = vcombine.high %v835, %v835
        %v858 = vcombine.high %v842, %v842
        %v859 = vcombine.high %v849, %v849
        %v860 = vcombine.high %v856, %v856
        %v861 = vlaneseq
        %v862 = vshrl.u32 %v861, 7
        %v863 = vsub.s32 0, %v862
        %v864 = vrot.slane %v835, %v863
        %v865 = vlaneseq
        %v866 = vshrl.u32 %v865, 7
        %v867 = vsub.s32 0, %v866
        %v868 = vrot.slane %v849, %v867
        %v869 = vlaneseq
        %v870 = vshrl.u32 %v869, 7
        %v871 = vsub.s32 0, %v870
        %v872 = vrot.slane %v857, %v871
        %v873 = vlaneseq
        %v874 = vshrl.u32 %v873, 7
        %v875 = vsub.s32 0, %v874
        %v876 = vrot.slane %v859, %v875
        %v877 = vlaneseq
        %v878 = vshrl.u32 %v877, 7
        %v879 = vsub.s32 0, %v878
        %v880 = vrot.slane %v842, %v879
        %v881 = vlaneseq
        %v882 = vshrl.u32 %v881, 7
        %v883 = vsub.s32 0, %v882
        %v884 = vrot.slane %v856, %v883
        %v885 = vlaneseq
        %v886 = vshrl.u32 %v885, 7
        %v887 = vsub.s32 0, %v886
        %v888 = vrot.slane %v858, %v887
        %v889 = vlaneseq
        %v890 = vshrl.u32 %v889, 7
        %v891 = vsub.s32 0, %v890
        %v892 = vrot.slane %v860, %v891
        %v901 = vmul.f32 %v803, %v864
        %v902 = vmul.f32 %v804, %v868
        %v903 = vmul.f32 %v805, %v872
        %v904 = vmul.f32 %v806, %v876
        %v905 = vmul.f32 %v807, %v880
        %v906 = vmul.f32 %v808, %v884
        %v907 = vmul.f32 %v809, %v888
        %v908 = vmul.f32 %v810, %v892
        %909 = vadd.xlane.f32.xlu0 %v901
        %v910 = vpop.xlane.xlu0 %909
        %911 = vadd.xlane.f32.xlu0 %v902
        %v912 = vpop.xlane.xlu0 %911
        %913 = vadd.xlane.f32.xlu0 %v903
        %v914 = vpop.xlane.xlu0 %913
        %915 = vadd.xlane.f32.xlu0 %v904
        %v916 = vpop.xlane.xlu0 %915
        %917 = vadd.xlane.f32.xlu0 %v905
        %v918 = vpop.xlane.xlu0 %917
        %919 = vadd.xlane.f32.xlu0 %v906
        %v920 = vpop.xlane.xlu0 %919
        %921 = vadd.xlane.f32.xlu0 %v907
        %v922 = vpop.xlane.xlu0 %921
        %923 = vadd.xlane.f32.xlu0 %v908
        %v924 = vpop.xlane.xlu0 %923
        %v925 = vmul.f32 %v910, 0.17677669
        %v926 = vmul.f32 %v912, 0.17677669
        %v927 = vmul.f32 %v914, 0.17677669
        %v928 = vmul.f32 %v916, 0.17677669
        %v929 = vmul.f32 %v918, 0.17677669
        %v930 = vmul.f32 %v920, 0.17677669
        %v931 = vmul.f32 %v922, 0.17677669
        %v932 = vmul.f32 %v924, 0.17677669
        %v941 = vlaneseq
        %v942 = vshrl.u32 %v941, 7
        %v943 = vsub.s32 %v497, %v942
        %v944 = vrot.slane %v925, %v943
        %v945 = vlaneseq
        %v946 = vshrl.u32 %v945, 7
        %v947 = vsub.s32 %v497, %v946
        %v948 = vrot.slane %v926, %v947
        %v949 = vlaneseq
        %v950 = vshrl.u32 %v949, 7
        %v951 = vsub.s32 %v497, %v950
        %v952 = vrot.slane %v927, %v951
        %v953 = vlaneseq
        %v954 = vshrl.u32 %v953, 7
        %v955 = vsub.s32 %v497, %v954
        %v956 = vrot.slane %v928, %v955
        %v957 = vlaneseq
        %v958 = vshrl.u32 %v957, 7
        %v959 = vsub.s32 %v497, %v958
        %v960 = vrot.slane %v929, %v959
        %v961 = vlaneseq
        %v962 = vshrl.u32 %v961, 7
        %v963 = vsub.s32 %v497, %v962
        %v964 = vrot.slane %v930, %v963
        %v965 = vlaneseq
        %v966 = vshrl.u32 %v965, 7
        %v967 = vsub.s32 %v497, %v966
        %v968 = vrot.slane %v931, %v967
        %v969 = vlaneseq
        %v970 = vshrl.u32 %v969, 7
        %v971 = vsub.s32 %v497, %v970
        %v972 = vrot.slane %v932, %v971
        %vm973 = vcmask 1041409
        %v974 = vsel %vm973, %v948, %v944
        %vm975 = vcmask 1042434
        %v976 = vsel %vm975, %v952, %v974
        %vm977 = vcmask 1043459
        %v978 = vsel %vm977, %v956, %v976
        %vm979 = vcmask 1044484
        %v980 = vsel %vm979, %v960, %v978
        %vm981 = vcmask 1045509
        %v982 = vsel %vm981, %v964, %v980
        %vm983 = vcmask 1046534
        %v984 = vsel %vm983, %v968, %v982
        %vm985 = vcmask 1047559
        %v986 = vsel %vm985, %v972, %v984
        %v988 = vsel %vm710, %v986, -inf
        %989 = vmax.xlane.f32.xlu0 %v988
        %v990 = vpop.xlane.xlu0 %989
        %v992 = vlaneseq
        %v993 = vshrl.u32 %v992, 7
        %v994 = vsub.s32 0, %v993
        %v995 = vrot.slane %v990, %v994
        %v996 = vlaneseq
        %v997 = vshrl.u32 %v996, 7
        %v998 = vsub.s32 1, %v997
        %v999 = vrot.slane %v990, %v998
        %v1000 = vlaneseq
        %v1001 = vshrl.u32 %v1000, 7
        %v1002 = vsub.s32 2, %v1001
        %v1003 = vrot.slane %v990, %v1002
        %v1004 = vlaneseq
        %v1005 = vshrl.u32 %v1004, 7
        %v1006 = vsub.s32 3, %v1005
        %v1007 = vrot.slane %v990, %v1006
        %v1008 = vlaneseq
        %v1009 = vshrl.u32 %v1008, 7
        %v1010 = vsub.s32 4, %v1009
        %v1011 = vrot.slane %v990, %v1010
        %v1012 = vlaneseq
        %v1013 = vshrl.u32 %v1012, 7
        %v1014 = vsub.s32 5, %v1013
        %v1015 = vrot.slane %v990, %v1014
        %v1016 = vlaneseq
        %v1017 = vshrl.u32 %v1016, 7
        %v1018 = vsub.s32 6, %v1017
        %v1019 = vrot.slane %v990, %v1018
        %v1020 = vlaneseq
        %v1021 = vshrl.u32 %v1020, 7
        %v1022 = vsub.s32 7, %v1021
        %v1023 = vrot.slane %v990, %v1022
        %v1032 = vsub.f32 %v925, %v995
        %v1033 = vsub.f32 %v926, %v999
        %v1034 = vsub.f32 %v927, %v1003
        %v1035 = vsub.f32 %v928, %v1007
        %v1036 = vsub.f32 %v929, %v1011
        %v1037 = vsub.f32 %v930, %v1015
        %v1038 = vsub.f32 %v931, %v1019
        %v1039 = vsub.f32 %v932, %v1023
        %v1040 = vmul.f32 %v1032, 1.442695
        %v1041 = vpow.pop %v1040
        %v1042 = vmul.f32 %v1033, 1.442695
        %v1043 = vpow.pop %v1042
        %v1044 = vmul.f32 %v1034, 1.442695
        %v1045 = vpow.pop %v1044
        %v1046 = vmul.f32 %v1035, 1.442695
        %v1047 = vpow.pop %v1046
        %v1048 = vmul.f32 %v1036, 1.442695
        %v1049 = vpow.pop %v1048
        %v1050 = vmul.f32 %v1037, 1.442695
        %v1051 = vpow.pop %v1050
        %v1052 = vmul.f32 %v1038, 1.442695
        %v1053 = vpow.pop %v1052
        %v1054 = vmul.f32 %v1039, 1.442695
        %v1055 = vpow.pop %v1054
        %1064 = vset.pattern.permute.xlu0 0
        %1065 = vperm.xlu0 %1064, %v1041
        %v1066 = vpop.permute.xlu0 %1065
        %1067 = vset.pattern.permute.xlu0 0
        %1068 = vperm.xlu0 %1067, %v1043
        %v1069 = vpop.permute.xlu0 %1068
        %1070 = vset.pattern.permute.xlu0 0
        %1071 = vperm.xlu0 %1070, %v1045
        %v1072 = vpop.permute.xlu0 %1071
        %1073 = vset.pattern.permute.xlu0 0
        %1074 = vperm.xlu0 %1073, %v1047
        %v1075 = vpop.permute.xlu0 %1074
        %1076 = vset.pattern.permute.xlu0 0
        %1077 = vperm.xlu0 %1076, %v1049
        %v1078 = vpop.permute.xlu0 %1077
        %1079 = vset.pattern.permute.xlu0 0
        %1080 = vperm.xlu0 %1079, %v1051
        %v1081 = vpop.permute.xlu0 %1080
        %1082 = vset.pattern.permute.xlu0 0
        %1083 = vperm.xlu0 %1082, %v1053
        %v1084 = vpop.permute.xlu0 %1083
        %1085 = vset.pattern.permute.xlu0 0
        %1086 = vperm.xlu0 %1085, %v1055
        %v1087 = vpop.permute.xlu0 %1086
        %v1088 = vlaneseq
        %v1089 = vshrl.u32 %v1088, 7
        %v1090 = vsub.s32 %v497, %v1089
        %v1091 = vrot.slane %v1066, %v1090
        %v1092 = vlaneseq
        %v1093 = vshrl.u32 %v1092, 7
        %v1094 = vsub.s32 %v497, %v1093
        %v1095 = vrot.slane %v1069, %v1094
        %v1096 = vlaneseq
        %v1097 = vshrl.u32 %v1096, 7
        %v1098 = vsub.s32 %v497, %v1097
        %v1099 = vrot.slane %v1072, %v1098
        %v1100 = vlaneseq
        %v1101 = vshrl.u32 %v1100, 7
        %v1102 = vsub.s32 %v497, %v1101
        %v1103 = vrot.slane %v1075, %v1102
        %v1104 = vlaneseq
        %v1105 = vshrl.u32 %v1104, 7
        %v1106 = vsub.s32 %v497, %v1105
        %v1107 = vrot.slane %v1078, %v1106
        %v1108 = vlaneseq
        %v1109 = vshrl.u32 %v1108, 7
        %v1110 = vsub.s32 %v497, %v1109
        %v1111 = vrot.slane %v1081, %v1110
        %v1112 = vlaneseq
        %v1113 = vshrl.u32 %v1112, 7
        %v1114 = vsub.s32 %v497, %v1113
        %v1115 = vrot.slane %v1084, %v1114
        %v1116 = vlaneseq
        %v1117 = vshrl.u32 %v1116, 7
        %v1118 = vsub.s32 %v497, %v1117
        %v1119 = vrot.slane %v1087, %v1118
        %v1120 = vsel %vm973, %v1095, %v1091
        %v1121 = vsel %vm975, %v1099, %v1120
        %v1122 = vsel %vm977, %v1103, %v1121
        %v1123 = vsel %vm979, %v1107, %v1122
        %v1124 = vsel %vm981, %v1111, %v1123
        %v1125 = vsel %vm983, %v1115, %v1124
        %v1126 = vsel %vm985, %v1119, %v1125
        %v1128 = vsel %vm710, %v1126, 0.0
        %1129 = vadd.xlane.f32.xlu0 %v1128
        %v1130 = vpop.xlane.xlu0 %1129
        %v1131 = vrcp.pop %v1130
        %v1133 = vlaneseq
        %v1134 = vshrl.u32 %v1133, 7
        %v1135 = vsub.s32 0, %v1134
        %v1136 = vrot.slane %v1131, %v1135
        %v1137 = vlaneseq
        %v1138 = vshrl.u32 %v1137, 7
        %v1139 = vsub.s32 1, %v1138
        %v1140 = vrot.slane %v1131, %v1139
        %v1141 = vlaneseq
        %v1142 = vshrl.u32 %v1141, 7
        %v1143 = vsub.s32 2, %v1142
        %v1144 = vrot.slane %v1131, %v1143
        %v1145 = vlaneseq
        %v1146 = vshrl.u32 %v1145, 7
        %v1147 = vsub.s32 3, %v1146
        %v1148 = vrot.slane %v1131, %v1147
        %v1149 = vlaneseq
        %v1150 = vshrl.u32 %v1149, 7
        %v1151 = vsub.s32 4, %v1150
        %v1152 = vrot.slane %v1131, %v1151
        %v1153 = vlaneseq
        %v1154 = vshrl.u32 %v1153, 7
        %v1155 = vsub.s32 5, %v1154
        %v1156 = vrot.slane %v1131, %v1155
        %v1157 = vlaneseq
        %v1158 = vshrl.u32 %v1157, 7
        %v1159 = vsub.s32 6, %v1158
        %v1160 = vrot.slane %v1131, %v1159
        %v1161 = vlaneseq
        %v1162 = vshrl.u32 %v1161, 7
        %v1163 = vsub.s32 7, %v1162
        %v1164 = vrot.slane %v1131, %v1163
        %v1173 = vmul.f32 %v1041, %v1136
        %v1174 = vmul.f32 %v1043, %v1140
        %v1175 = vmul.f32 %v1045, %v1144
        %v1176 = vmul.f32 %v1047, %v1148
        %v1177 = vmul.f32 %v1049, %v1152
        %v1178 = vmul.f32 %v1051, %v1156
        %v1179 = vmul.f32 %v1053, %v1160
        %v1180 = vmul.f32 %v1055, %v1164
        %v1181 = vadd.f32 %v614, %v767
        %v1182 = vadd.f32 %v617, %v771
        %v1183 = vadd.f32 %v622, %v777
        %v1184 = vadd.f32 %v625, %v781
        %v1185 = vadd.f32 %v630, %v787
        %v1186 = vadd.f32 %v633, %v791
        %v1187 = vadd.f32 %v638, %v797
        %v1188 = vadd.f32 %v641, %v801
        %1190 = vset.pattern.permute.xlu0 0
        %1191 = vperm.xlu0 %1190, %v1173
        %v1192 = vpop.permute.xlu0 %1191
        %1195 = vset.pattern.permute.xlu0 0
        %1196 = vperm.xlu0 %1195, %v1174
        %v1197 = vpop.permute.xlu0 %1196
        %1200 = vset.pattern.permute.xlu0 0
        %1201 = vperm.xlu0 %1200, %v1175
        %v1202 = vpop.permute.xlu0 %1201
        %1205 = vset.pattern.permute.xlu0 0
        %1206 = vperm.xlu0 %1205, %v1176
        %v1207 = vpop.permute.xlu0 %1206
        %1210 = vset.pattern.permute.xlu0 0
        %1211 = vperm.xlu0 %1210, %v1177
        %v1212 = vpop.permute.xlu0 %1211
        %1215 = vset.pattern.permute.xlu0 0
        %1216 = vperm.xlu0 %1215, %v1178
        %v1217 = vpop.permute.xlu0 %1216
        %1220 = vset.pattern.permute.xlu0 0
        %1221 = vperm.xlu0 %1220, %v1179
        %v1222 = vpop.permute.xlu0 %1221
        %1225 = vset.pattern.permute.xlu0 0
        %1226 = vperm.xlu0 %1225, %v1180
        %v1227 = vpop.permute.xlu0 %1226
        %v1229 = vmul.f32 %v1192, %v1181
        %v1230 = vmul.f32 %v1197, %v1182
        %v1231 = vmul.f32 %v1202, %v1183
        %v1232 = vmul.f32 %v1207, %v1184
        %v1233 = vmul.f32 %v1212, %v1185
        %v1234 = vmul.f32 %v1217, %v1186
        %v1235 = vmul.f32 %v1222, %v1187
        %v1236 = vmul.f32 %v1227, %v1188
        %v1237 = vrot.slane %v1229, 4
        %v1238 = vadd.f32 %v1229, %v1237
        %v1239 = vrot.slane %v1238, 2
        %v1240 = vadd.f32 %v1238, %v1239
        %v1241 = vrot.slane %v1240, 1
        %v1242 = vadd.f32 %v1240, %v1241
        %v1243 = vrot.slane %v1230, 4
        %v1244 = vadd.f32 %v1230, %v1243
        %v1245 = vrot.slane %v1244, 2
        %v1246 = vadd.f32 %v1244, %v1245
        %v1247 = vrot.slane %v1246, 1
        %v1248 = vadd.f32 %v1246, %v1247
        %v1249 = vrot.slane %v1231, 4
        %v1250 = vadd.f32 %v1231, %v1249
        %v1251 = vrot.slane %v1250, 2
        %v1252 = vadd.f32 %v1250, %v1251
        %v1253 = vrot.slane %v1252, 1
        %v1254 = vadd.f32 %v1252, %v1253
        %v1255 = vrot.slane %v1232, 4
        %v1256 = vadd.f32 %v1232, %v1255
        %v1257 = vrot.slane %v1256, 2
        %v1258 = vadd.f32 %v1256, %v1257
        %v1259 = vrot.slane %v1258, 1
        %v1260 = vadd.f32 %v1258, %v1259
        %v1261 = vrot.slane %v1233, 4
        %v1262 = vadd.f32 %v1233, %v1261
        %v1263 = vrot.slane %v1262, 2
        %v1264 = vadd.f32 %v1262, %v1263
        %v1265 = vrot.slane %v1264, 1
        %v1266 = vadd.f32 %v1264, %v1265
        %v1267 = vrot.slane %v1234, 4
        %v1268 = vadd.f32 %v1234, %v1267
        %v1269 = vrot.slane %v1268, 2
        %v1270 = vadd.f32 %v1268, %v1269
        %v1271 = vrot.slane %v1270, 1
        %v1272 = vadd.f32 %v1270, %v1271
        %v1273 = vrot.slane %v1235, 4
        %v1274 = vadd.f32 %v1235, %v1273
        %v1275 = vrot.slane %v1274, 2
        %v1276 = vadd.f32 %v1274, %v1275
        %v1277 = vrot.slane %v1276, 1
        %v1278 = vadd.f32 %v1276, %v1277
        %v1279 = vrot.slane %v1236, 4
        %v1280 = vadd.f32 %v1236, %v1279
        %v1281 = vrot.slane %v1280, 2
        %v1282 = vadd.f32 %v1280, %v1281
        %v1283 = vrot.slane %v1282, 1
        %v1284 = vadd.f32 %v1282, %v1283
        %v1285 = vld [vmem:[%s388] sm:$0xff]
        %1286 = vset.pattern.permute.xlu0 0
        %1287 = vperm.xlu0 %1286, %v1285
        %v1288 = vpop.permute.xlu0 %1287
        %vm1289 = vcmp.eq.s32.totalorder %v497, %v1288
        %v1290 = vsel %vm1289, 1, 0
        %v1291 = vcvt.s32.f32 %v1290
        %v1292 = vlaneseq
        %v1293 = vshrl.u32 %v1292, 7
        %v1294 = vsub.s32 0, %v1293
        %v1295 = vrot.slane %v1291, %v1294
        %1297 = vbcast.lane.b32.xlu0 %v1295, 256
        %v1298 = vpop.permute.xlu0 %1297
        %v1299 = vlaneseq
        %v1300 = vshrl.u32 %v1299, 7
        %v1301 = vsub.s32 1, %v1300
        %v1302 = vrot.slane %v1291, %v1301
        %1304 = vbcast.lane.b32.xlu0 %v1302, 256
        %v1305 = vpop.permute.xlu0 %1304
        %v1306 = vlaneseq
        %v1307 = vshrl.u32 %v1306, 7
        %v1308 = vsub.s32 2, %v1307
        %v1309 = vrot.slane %v1291, %v1308
        %1311 = vbcast.lane.b32.xlu0 %v1309, 256
        %v1312 = vpop.permute.xlu0 %1311
        %v1313 = vlaneseq
        %v1314 = vshrl.u32 %v1313, 7
        %v1315 = vsub.s32 3, %v1314
        %v1316 = vrot.slane %v1291, %v1315
        %1318 = vbcast.lane.b32.xlu0 %v1316, 256
        %v1319 = vpop.permute.xlu0 %1318
        %v1320 = vlaneseq
        %v1321 = vshrl.u32 %v1320, 7
        %v1322 = vsub.s32 4, %v1321
        %v1323 = vrot.slane %v1291, %v1322
        %1325 = vbcast.lane.b32.xlu0 %v1323, 256
        %v1326 = vpop.permute.xlu0 %1325
        %v1327 = vlaneseq
        %v1328 = vshrl.u32 %v1327, 7
        %v1329 = vsub.s32 5, %v1328
        %v1330 = vrot.slane %v1291, %v1329
        %1332 = vbcast.lane.b32.xlu0 %v1330, 256
        %v1333 = vpop.permute.xlu0 %1332
        %v1334 = vlaneseq
        %v1335 = vshrl.u32 %v1334, 7
        %v1336 = vsub.s32 6, %v1335
        %v1337 = vrot.slane %v1291, %v1336
        %1339 = vbcast.lane.b32.xlu0 %v1337, 256
        %v1340 = vpop.permute.xlu0 %1339
        %v1341 = vlaneseq
        %v1342 = vshrl.u32 %v1341, 7
        %v1343 = vsub.s32 7, %v1342
        %v1344 = vrot.slane %v1291, %v1343
        %1346 = vbcast.lane.b32.xlu0 %v1344, 256
        %v1347 = vpop.permute.xlu0 %1346
        %v1348 = vmul.f32 %v1298, %v614
        %v1349 = vmul.f32 %v1305, %v617
        %v1350 = vmul.f32 %v1312, %v622
        %v1351 = vmul.f32 %v1319, %v625
        %v1352 = vmul.f32 %v1326, %v630
        %v1353 = vmul.f32 %v1333, %v633
        %v1354 = vmul.f32 %v1340, %v638
        %v1355 = vmul.f32 %v1347, %v641
        %v1356 = vrot.slane %v1348, 4
        %v1357 = vadd.f32 %v1348, %v1356
        %v1358 = vrot.slane %v1357, 2
        %v1359 = vadd.f32 %v1357, %v1358
        %v1360 = vrot.slane %v1359, 1
        %v1361 = vadd.f32 %v1359, %v1360
        %v1362 = vrot.slane %v1349, 4
        %v1363 = vadd.f32 %v1349, %v1362
        %v1364 = vrot.slane %v1363, 2
        %v1365 = vadd.f32 %v1363, %v1364
        %v1366 = vrot.slane %v1365, 1
        %v1367 = vadd.f32 %v1365, %v1366
        %v1368 = vrot.slane %v1350, 4
        %v1369 = vadd.f32 %v1350, %v1368
        %v1370 = vrot.slane %v1369, 2
        %v1371 = vadd.f32 %v1369, %v1370
        %v1372 = vrot.slane %v1371, 1
        %v1373 = vadd.f32 %v1371, %v1372
        %v1374 = vrot.slane %v1351, 4
        %v1375 = vadd.f32 %v1351, %v1374
        %v1376 = vrot.slane %v1375, 2
        %v1377 = vadd.f32 %v1375, %v1376
        %v1378 = vrot.slane %v1377, 1
        %v1379 = vadd.f32 %v1377, %v1378
        %v1380 = vrot.slane %v1352, 4
        %v1381 = vadd.f32 %v1352, %v1380
        %v1382 = vrot.slane %v1381, 2
        %v1383 = vadd.f32 %v1381, %v1382
        %v1384 = vrot.slane %v1383, 1
        %v1385 = vadd.f32 %v1383, %v1384
        %v1386 = vrot.slane %v1353, 4
        %v1387 = vadd.f32 %v1353, %v1386
        %v1388 = vrot.slane %v1387, 2
        %v1389 = vadd.f32 %v1387, %v1388
        %v1390 = vrot.slane %v1389, 1
        %v1391 = vadd.f32 %v1389, %v1390
        %v1392 = vrot.slane %v1354, 4
        %v1393 = vadd.f32 %v1354, %v1392
        %v1394 = vrot.slane %v1393, 2
        %v1395 = vadd.f32 %v1393, %v1394
        %v1396 = vrot.slane %v1395, 1
        %v1397 = vadd.f32 %v1395, %v1396
        %v1398 = vrot.slane %v1355, 4
        %v1399 = vadd.f32 %v1355, %v1398
        %v1400 = vrot.slane %v1399, 2
        %v1401 = vadd.f32 %v1399, %v1400
        %v1402 = vrot.slane %v1401, 1
        %v1403 = vadd.f32 %v1401, %v1402
        %v1404 = vmul.f32 %v1361, %v614
        %v1405 = vmul.f32 %v1367, %v617
        %v1406 = vmul.f32 %v1373, %v622
        %v1407 = vmul.f32 %v1379, %v625
        %v1408 = vmul.f32 %v1385, %v630
        %v1409 = vmul.f32 %v1391, %v633
        %v1410 = vmul.f32 %v1397, %v638
        %v1411 = vmul.f32 %v1403, %v641
        %1412 = vadd.xlane.f32.xlu0 %v1404
        %v1413 = vpop.xlane.xlu0 %1412
        %1414 = vadd.xlane.f32.xlu0 %v1405
        %v1415 = vpop.xlane.xlu0 %1414
        %1416 = vadd.xlane.f32.xlu0 %v1406
        %v1417 = vpop.xlane.xlu0 %1416
        %1418 = vadd.xlane.f32.xlu0 %v1407
        %v1419 = vpop.xlane.xlu0 %1418
        %1420 = vadd.xlane.f32.xlu0 %v1408
        %v1421 = vpop.xlane.xlu0 %1420
        %1422 = vadd.xlane.f32.xlu0 %v1409
        %v1423 = vpop.xlane.xlu0 %1422
        %1424 = vadd.xlane.f32.xlu0 %v1410
        %v1425 = vpop.xlane.xlu0 %1424
        %1426 = vadd.xlane.f32.xlu0 %v1411
        %v1427 = vpop.xlane.xlu0 %1426
        %v1428 = vmul.f32 %v1413, 0.17677669
        %v1429 = vmul.f32 %v1415, 0.17677669
        %v1430 = vmul.f32 %v1417, 0.17677669
        %v1431 = vmul.f32 %v1419, 0.17677669
        %v1432 = vmul.f32 %v1421, 0.17677669
        %v1433 = vmul.f32 %v1423, 0.17677669
        %v1434 = vmul.f32 %v1425, 0.17677669
        %v1435 = vmul.f32 %v1427, 0.17677669
        %v1444 = vlaneseq
        %v1445 = vshrl.u32 %v1444, 7
        %v1446 = vsub.s32 %v497, %v1445
        %v1447 = vrot.slane %v1428, %v1446
        %v1448 = vlaneseq
        %v1449 = vshrl.u32 %v1448, 7
        %v1450 = vsub.s32 %v497, %v1449
        %v1451 = vrot.slane %v1429, %v1450
        %v1452 = vlaneseq
        %v1453 = vshrl.u32 %v1452, 7
        %v1454 = vsub.s32 %v497, %v1453
        %v1455 = vrot.slane %v1430, %v1454
        %v1456 = vlaneseq
        %v1457 = vshrl.u32 %v1456, 7
        %v1458 = vsub.s32 %v497, %v1457
        %v1459 = vrot.slane %v1431, %v1458
        %v1460 = vlaneseq
        %v1461 = vshrl.u32 %v1460, 7
        %v1462 = vsub.s32 %v497, %v1461
        %v1463 = vrot.slane %v1432, %v1462
        %v1464 = vlaneseq
        %v1465 = vshrl.u32 %v1464, 7
        %v1466 = vsub.s32 %v497, %v1465
        %v1467 = vrot.slane %v1433, %v1466
        %v1468 = vlaneseq
        %v1469 = vshrl.u32 %v1468, 7
        %v1470 = vsub.s32 %v497, %v1469
        %v1471 = vrot.slane %v1434, %v1470
        %v1472 = vlaneseq
        %v1473 = vshrl.u32 %v1472, 7
        %v1474 = vsub.s32 %v497, %v1473
        %v1475 = vrot.slane %v1435, %v1474
        %v1476 = vsel %vm973, %v1451, %v1447
        %v1477 = vsel %vm975, %v1455, %v1476
        %v1478 = vsel %vm977, %v1459, %v1477
        %v1479 = vsel %vm979, %v1463, %v1478
        %v1480 = vsel %vm981, %v1467, %v1479
        %v1481 = vsel %vm983, %v1471, %v1480
        %v1482 = vsel %vm985, %v1475, %v1481
        %v1484 = vsel %vm710, %v1482, -inf
        %1485 = vmax.xlane.f32.xlu0 %v1484
        %v1486 = vpop.xlane.xlu0 %1485
        %v1488 = vlaneseq
        %v1489 = vshrl.u32 %v1488, 7
        %v1490 = vsub.s32 0, %v1489
        %v1491 = vrot.slane %v1486, %v1490
        %v1492 = vlaneseq
        %v1493 = vshrl.u32 %v1492, 7
        %v1494 = vsub.s32 1, %v1493
        %v1495 = vrot.slane %v1486, %v1494
        %v1496 = vlaneseq
        %v1497 = vshrl.u32 %v1496, 7
        %v1498 = vsub.s32 2, %v1497
        %v1499 = vrot.slane %v1486, %v1498
        %v1500 = vlaneseq
        %v1501 = vshrl.u32 %v1500, 7
        %v1502 = vsub.s32 3, %v1501
        %v1503 = vrot.slane %v1486, %v1502
        %v1504 = vlaneseq
        %v1505 = vshrl.u32 %v1504, 7
        %v1506 = vsub.s32 4, %v1505
        %v1507 = vrot.slane %v1486, %v1506
        %v1508 = vlaneseq
        %v1509 = vshrl.u32 %v1508, 7
        %v1510 = vsub.s32 5, %v1509
        %v1511 = vrot.slane %v1486, %v1510
        %v1512 = vlaneseq
        %v1513 = vshrl.u32 %v1512, 7
        %v1514 = vsub.s32 6, %v1513
        %v1515 = vrot.slane %v1486, %v1514
        %v1516 = vlaneseq
        %v1517 = vshrl.u32 %v1516, 7
        %v1518 = vsub.s32 7, %v1517
        %v1519 = vrot.slane %v1486, %v1518
        %v1528 = vsub.f32 %v1428, %v1491
        %v1529 = vsub.f32 %v1429, %v1495
        %v1530 = vsub.f32 %v1430, %v1499
        %v1531 = vsub.f32 %v1431, %v1503
        %v1532 = vsub.f32 %v1432, %v1507
        %v1533 = vsub.f32 %v1433, %v1511
        %v1534 = vsub.f32 %v1434, %v1515
        %v1535 = vsub.f32 %v1435, %v1519
        %v1536 = vmul.f32 %v1528, 1.442695
        %v1537 = vpow.pop %v1536
        %v1538 = vmul.f32 %v1529, 1.442695
        %v1539 = vpow.pop %v1538
        %v1540 = vmul.f32 %v1530, 1.442695
        %v1541 = vpow.pop %v1540
        %v1542 = vmul.f32 %v1531, 1.442695
        %v1543 = vpow.pop %v1542
        %v1544 = vmul.f32 %v1532, 1.442695
        %v1545 = vpow.pop %v1544
        %v1546 = vmul.f32 %v1533, 1.442695
        %v1547 = vpow.pop %v1546
        %v1548 = vmul.f32 %v1534, 1.442695
        %v1549 = vpow.pop %v1548
        %v1550 = vmul.f32 %v1535, 1.442695
        %v1551 = vpow.pop %v1550
        %1560 = vset.pattern.permute.xlu0 0
        %1561 = vperm.xlu0 %1560, %v1537
        %v1562 = vpop.permute.xlu0 %1561
        %1563 = vset.pattern.permute.xlu0 0
        %1564 = vperm.xlu0 %1563, %v1539
        %v1565 = vpop.permute.xlu0 %1564
        %1566 = vset.pattern.permute.xlu0 0
        %1567 = vperm.xlu0 %1566, %v1541
        %v1568 = vpop.permute.xlu0 %1567
        %1569 = vset.pattern.permute.xlu0 0
        %1570 = vperm.xlu0 %1569, %v1543
        %v1571 = vpop.permute.xlu0 %1570
        %1572 = vset.pattern.permute.xlu0 0
        %1573 = vperm.xlu0 %1572, %v1545
        %v1574 = vpop.permute.xlu0 %1573
        %1575 = vset.pattern.permute.xlu0 0
        %1576 = vperm.xlu0 %1575, %v1547
        %v1577 = vpop.permute.xlu0 %1576
        %1578 = vset.pattern.permute.xlu0 0
        %1579 = vperm.xlu0 %1578, %v1549
        %v1580 = vpop.permute.xlu0 %1579
        %1581 = vset.pattern.permute.xlu0 0
        %1582 = vperm.xlu0 %1581, %v1551
        %v1583 = vpop.permute.xlu0 %1582
        %v1584 = vlaneseq
        %v1585 = vshrl.u32 %v1584, 7
        %v1586 = vsub.s32 %v497, %v1585
        %v1587 = vrot.slane %v1562, %v1586
        %v1588 = vlaneseq
        %v1589 = vshrl.u32 %v1588, 7
        %v1590 = vsub.s32 %v497, %v1589
        %v1591 = vrot.slane %v1565, %v1590
        %v1592 = vlaneseq
        %v1593 = vshrl.u32 %v1592, 7
        %v1594 = vsub.s32 %v497, %v1593
        %v1595 = vrot.slane %v1568, %v1594
        %v1596 = vlaneseq
        %v1597 = vshrl.u32 %v1596, 7
        %v1598 = vsub.s32 %v497, %v1597
        %v1599 = vrot.slane %v1571, %v1598
        %v1600 = vlaneseq
        %v1601 = vshrl.u32 %v1600, 7
        %v1602 = vsub.s32 %v497, %v1601
        %v1603 = vrot.slane %v1574, %v1602
        %v1604 = vlaneseq
        %v1605 = vshrl.u32 %v1604, 7
        %v1606 = vsub.s32 %v497, %v1605
        %v1607 = vrot.slane %v1577, %v1606
        %v1608 = vlaneseq
        %v1609 = vshrl.u32 %v1608, 7
        %v1610 = vsub.s32 %v497, %v1609
        %v1611 = vrot.slane %v1580, %v1610
        %v1612 = vlaneseq
        %v1613 = vshrl.u32 %v1612, 7
        %v1614 = vsub.s32 %v497, %v1613
        %v1615 = vrot.slane %v1583, %v1614
        %v1616 = vsel %vm973, %v1591, %v1587
        %v1617 = vsel %vm975, %v1595, %v1616
        %v1618 = vsel %vm977, %v1599, %v1617
        %v1619 = vsel %vm979, %v1603, %v1618
        %v1620 = vsel %vm981, %v1607, %v1619
        %v1621 = vsel %vm983, %v1611, %v1620
        %v1622 = vsel %vm985, %v1615, %v1621
        %v1624 = vsel %vm710, %v1622, 0.0
        %1625 = vadd.xlane.f32.xlu0 %v1624
        %v1626 = vpop.xlane.xlu0 %1625
        %v1627 = vrcp.pop %v1626
        %v1629 = vlaneseq
        %v1630 = vshrl.u32 %v1629, 7
        %v1631 = vsub.s32 0, %v1630
        %v1632 = vrot.slane %v1627, %v1631
        %v1633 = vlaneseq
        %v1634 = vshrl.u32 %v1633, 7
        %v1635 = vsub.s32 1, %v1634
        %v1636 = vrot.slane %v1627, %v1635
        %v1637 = vlaneseq
        %v1638 = vshrl.u32 %v1637, 7
        %v1639 = vsub.s32 2, %v1638
        %v1640 = vrot.slane %v1627, %v1639
        %v1641 = vlaneseq
        %v1642 = vshrl.u32 %v1641, 7
        %v1643 = vsub.s32 3, %v1642
        %v1644 = vrot.slane %v1627, %v1643
        %v1645 = vlaneseq
        %v1646 = vshrl.u32 %v1645, 7
        %v1647 = vsub.s32 4, %v1646
        %v1648 = vrot.slane %v1627, %v1647
        %v1649 = vlaneseq
        %v1650 = vshrl.u32 %v1649, 7
        %v1651 = vsub.s32 5, %v1650
        %v1652 = vrot.slane %v1627, %v1651
        %v1653 = vlaneseq
        %v1654 = vshrl.u32 %v1653, 7
        %v1655 = vsub.s32 6, %v1654
        %v1656 = vrot.slane %v1627, %v1655
        %v1657 = vlaneseq
        %v1658 = vshrl.u32 %v1657, 7
        %v1659 = vsub.s32 7, %v1658
        %v1660 = vrot.slane %v1627, %v1659
        %v1669 = vmul.f32 %v1537, %v1632
        %v1670 = vmul.f32 %v1539, %v1636
        %v1671 = vmul.f32 %v1541, %v1640
        %v1672 = vmul.f32 %v1543, %v1644
        %v1673 = vmul.f32 %v1545, %v1648
        %v1674 = vmul.f32 %v1547, %v1652
        %v1675 = vmul.f32 %v1549, %v1656
        %v1676 = vmul.f32 %v1551, %v1660
        %1678 = vset.pattern.permute.xlu0 0
        %1679 = vperm.xlu0 %1678, %v1669
        %v1680 = vpop.permute.xlu0 %1679
        %1683 = vset.pattern.permute.xlu0 0
        %1684 = vperm.xlu0 %1683, %v1670
        %v1685 = vpop.permute.xlu0 %1684
        %1688 = vset.pattern.permute.xlu0 0
        %1689 = vperm.xlu0 %1688, %v1671
        %v1690 = vpop.permute.xlu0 %1689
        %1693 = vset.pattern.permute.xlu0 0
        %1694 = vperm.xlu0 %1693, %v1672
        %v1695 = vpop.permute.xlu0 %1694
        %1698 = vset.pattern.permute.xlu0 0
        %1699 = vperm.xlu0 %1698, %v1673
        %v1700 = vpop.permute.xlu0 %1699
        %1703 = vset.pattern.permute.xlu0 0
        %1704 = vperm.xlu0 %1703, %v1674
        %v1705 = vpop.permute.xlu0 %1704
        %1708 = vset.pattern.permute.xlu0 0
        %1709 = vperm.xlu0 %1708, %v1675
        %v1710 = vpop.permute.xlu0 %1709
        %1713 = vset.pattern.permute.xlu0 0
        %1714 = vperm.xlu0 %1713, %v1676
        %v1715 = vpop.permute.xlu0 %1714
        %v1717 = vmul.f32 %v1680, %v614
        %v1718 = vmul.f32 %v1685, %v617
        %v1719 = vmul.f32 %v1690, %v622
        %v1720 = vmul.f32 %v1695, %v625
        %v1721 = vmul.f32 %v1700, %v630
        %v1722 = vmul.f32 %v1705, %v633
        %v1723 = vmul.f32 %v1710, %v638
        %v1724 = vmul.f32 %v1715, %v641
        %v1725 = vrot.slane %v1717, 4
        %v1726 = vadd.f32 %v1717, %v1725
        %v1727 = vrot.slane %v1726, 2
        %v1728 = vadd.f32 %v1726, %v1727
        %v1729 = vrot.slane %v1728, 1
        %v1730 = vadd.f32 %v1728, %v1729
        %v1731 = vrot.slane %v1718, 4
        %v1732 = vadd.f32 %v1718, %v1731
        %v1733 = vrot.slane %v1732, 2
        %v1734 = vadd.f32 %v1732, %v1733
        %v1735 = vrot.slane %v1734, 1
        %v1736 = vadd.f32 %v1734, %v1735
        %v1737 = vrot.slane %v1719, 4
        %v1738 = vadd.f32 %v1719, %v1737
        %v1739 = vrot.slane %v1738, 2
        %v1740 = vadd.f32 %v1738, %v1739
        %v1741 = vrot.slane %v1740, 1
        %v1742 = vadd.f32 %v1740, %v1741
        %v1743 = vrot.slane %v1720, 4
        %v1744 = vadd.f32 %v1720, %v1743
        %v1745 = vrot.slane %v1744, 2
        %v1746 = vadd.f32 %v1744, %v1745
        %v1747 = vrot.slane %v1746, 1
        %v1748 = vadd.f32 %v1746, %v1747
        %v1749 = vrot.slane %v1721, 4
        %v1750 = vadd.f32 %v1721, %v1749
        %v1751 = vrot.slane %v1750, 2
        %v1752 = vadd.f32 %v1750, %v1751
        %v1753 = vrot.slane %v1752, 1
        %v1754 = vadd.f32 %v1752, %v1753
        %v1755 = vrot.slane %v1722, 4
        %v1756 = vadd.f32 %v1722, %v1755
        %v1757 = vrot.slane %v1756, 2
        %v1758 = vadd.f32 %v1756, %v1757
        %v1759 = vrot.slane %v1758, 1
        %v1760 = vadd.f32 %v1758, %v1759
        %v1761 = vrot.slane %v1723, 4
        %v1762 = vadd.f32 %v1723, %v1761
        %v1763 = vrot.slane %v1762, 2
        %v1764 = vadd.f32 %v1762, %v1763
        %v1765 = vrot.slane %v1764, 1
        %v1766 = vadd.f32 %v1764, %v1765
        %v1767 = vrot.slane %v1724, 4
        %v1768 = vadd.f32 %v1724, %v1767
        %v1769 = vrot.slane %v1768, 2
        %v1770 = vadd.f32 %v1768, %v1769
        %v1771 = vrot.slane %v1770, 1
        %v1772 = vadd.f32 %v1770, %v1771
        %v1773 = vpack.c.bf16 %v1242, %v1242
        %v1774 = vpack.c.bf16 %v1248, %v1248
        %v1775 = vpack.c.bf16 %v1254, %v1254
        %v1776 = vpack.c.bf16 %v1260, %v1260
        %v1777 = vpack.c.bf16 %v1266, %v1266
        %v1778 = vpack.c.bf16 %v1272, %v1272
        %v1779 = vpack.c.bf16 %v1278, %v1278
        %v1780 = vpack.c.bf16 %v1284, %v1284
        %v1781 = vld [vmem:[%s7] sm:$0xf]
        %v1782 = vld [vmem:[%s7 + $0x4] sm:$0xf]
        %v1783 = vld [vmem:[%s7 + $0x8] sm:$0xf]
        %v1784 = vld [vmem:[%s7 + $0xc] sm:$0xf]
        %v1785 = vld [vmem:[%s7 + $0x10] sm:$0xf]
        %v1786 = vld [vmem:[%s7 + $0x14] sm:$0xf]
        %v1787 = vld [vmem:[%s7 + $0x18] sm:$0xf]
        %v1788 = vld [vmem:[%s7 + $0x1c] sm:$0xf]
        %v1789 = vld [vmem:[%s7 + $0x20] sm:$0xf]
        %v1790 = vld [vmem:[%s7 + $0x24] sm:$0xf]
        %v1791 = vld [vmem:[%s7 + $0x28] sm:$0xf]
        %v1792 = vld [vmem:[%s7 + $0x2c] sm:$0xf]
        %v1793 = vld [vmem:[%s7 + $0x30] sm:$0xf]
        %v1794 = vld [vmem:[%s7 + $0x34] sm:$0xf]
        %v1795 = vld [vmem:[%s7 + $0x38] sm:$0xf]
        %v1796 = vld [vmem:[%s7 + $0x3c] sm:$0xf]
        %v1797 = vpack.c.bf16 %v1730, %v1730
        %v1798 = vpack.c.bf16 %v1736, %v1736
        %v1799 = vpack.c.bf16 %v1742, %v1742
        %v1800 = vpack.c.bf16 %v1748, %v1748
        %v1801 = vpack.c.bf16 %v1754, %v1754
        %v1802 = vpack.c.bf16 %v1760, %v1760
        %v1803 = vpack.c.bf16 %v1766, %v1766
        %v1804 = vpack.c.bf16 %v1772, %v1772
        %v1805 = vld [vmem:[%s8] sm:$0xf]
        %v1806 = vld [vmem:[%s8 + $0x4] sm:$0xf]
        %v1807 = vld [vmem:[%s8 + $0x8] sm:$0xf]
        %v1808 = vld [vmem:[%s8 + $0xc] sm:$0xf]
        %v1809 = vld [vmem:[%s8 + $0x10] sm:$0xf]
        %v1810 = vld [vmem:[%s8 + $0x14] sm:$0xf]
        %v1811 = vld [vmem:[%s8 + $0x18] sm:$0xf]
        %v1812 = vld [vmem:[%s8 + $0x1c] sm:$0xf]
        %v1813 = vld [vmem:[%s8 + $0x20] sm:$0xf]
        %v1814 = vld [vmem:[%s8 + $0x24] sm:$0xf]
        %v1815 = vld [vmem:[%s8 + $0x28] sm:$0xf]
        %v1816 = vld [vmem:[%s8 + $0x2c] sm:$0xf]
        %v1817 = vld [vmem:[%s8 + $0x30] sm:$0xf]
        %v1818 = vld [vmem:[%s8 + $0x34] sm:$0xf]
        %v1819 = vld [vmem:[%s8 + $0x38] sm:$0xf]
        %v1820 = vld [vmem:[%s8 + $0x3c] sm:$0xf]
        %v1829 = vunpack.c.l.b16 %v1797
        %v1830 = vunpack.c.l.b16 %v1798
        %v1831 = vunpack.c.l.b16 %v1799
        %v1832 = vunpack.c.l.b16 %v1800
        %v1833 = vunpack.c.l.b16 %v1801
        %v1834 = vunpack.c.l.b16 %v1802
        %v1835 = vunpack.c.l.b16 %v1803
        %v1836 = vunpack.c.l.b16 %v1804
        %v1837 = vsel %vm973, %v1830, %v1829
        %v1838 = vsel %vm975, %v1831, %v1837
        %v1839 = vsel %vm977, %v1832, %v1838
        %v1840 = vsel %vm979, %v1833, %v1839
        %v1841 = vsel %vm981, %v1834, %v1840
        %v1842 = vsel %vm983, %v1835, %v1841
        %v1843 = vsel %vm985, %v1836, %v1842
        %v1844 = vpack.c.b16 %v1843, %v1843
        %v1862 = vunpack.c.l.b16 %v1805
        %v1863 = vunpack.c.l.b16 %v1806
        %v1864 = vunpack.c.l.b16 %v1807
        %v1865 = vunpack.c.l.b16 %v1808
        %v1866 = vunpack.c.l.b16 %v1809
        %v1867 = vunpack.c.l.b16 %v1810
        %v1868 = vunpack.c.l.b16 %v1811
        %v1869 = vunpack.c.l.b16 %v1812
        %v1870 = vunpack.c.l.b16 %v1813
        %v1871 = vunpack.c.l.b16 %v1814
        %v1872 = vunpack.c.l.b16 %v1815
        %v1873 = vunpack.c.l.b16 %v1816
        %v1874 = vunpack.c.l.b16 %v1817
        %v1875 = vunpack.c.l.b16 %v1818
        %v1876 = vunpack.c.l.b16 %v1819
        %v1877 = vunpack.c.l.b16 %v1820
        %v1878 = vpack.c.b16 %v1863, %v1862
        %v1879 = vpack.c.b16 %v1865, %v1864
        %v1880 = vpack.c.b16 %v1867, %v1866
        %v1881 = vpack.c.b16 %v1869, %v1868
        %v1882 = vpack.c.b16 %v1871, %v1870
        %v1883 = vpack.c.b16 %v1873, %v1872
        %v1884 = vpack.c.b16 %v1875, %v1874
        %v1885 = vpack.c.b16 %v1877, %v1876
        %1894 = vmatprep.subr.bf16.mxu0 0
        %1895 = vmatpush1.bf16.msra.mxu0 %v1878
        %1896 = vmatprep.subr.bf16.mxu0 0
        %1897 = vmatpush1.bf16.msra.mxu0 %v1879
        %1898 = vmatprep.subr.bf16.mxu0 0
        %1899 = vmatpush1.bf16.msra.mxu0 %v1880
        %1900 = vmatprep.subr.bf16.mxu0 0
        %1901 = vmatpush1.bf16.msra.mxu0 %v1881
        %1902 = vmatprep.subr.bf16.mxu0 0
        %1903 = vmatpush1.bf16.msra.mxu0 %v1882
        %1904 = vmatprep.subr.bf16.mxu0 0
        %1905 = vmatpush1.bf16.msra.mxu0 %v1883
        %1906 = vmatprep.subr.bf16.mxu0 0
        %1907 = vmatpush1.bf16.msra.mxu0 %v1884
        %1908 = vmatprep.subr.bf16.mxu0 0
        %1909 = vmatpush1.bf16.msra.mxu0 %v1885
        %1910 = vmatprep.subr.bf16.mxu0 0
        %1911 = vmatpush1.bf16.msra.mxu0 0
        %1912 = vmatprep.subr.bf16.mxu0 0
        %1913 = vmatpush1.bf16.msra.mxu0 0
        %1914 = vmatprep.subr.bf16.mxu0 0
        %1915 = vmatpush1.bf16.msra.mxu0 0
        %1916 = vmatprep.subr.bf16.mxu0 0
        %1917 = vmatpush1.bf16.msra.mxu0 0
        %1918 = vmatprep.subr.bf16.mxu0 0
        %1919 = vmatpush1.bf16.msra.mxu0 0
        %1920 = vmatprep.subr.bf16.mxu0 0
        %1921 = vmatpush1.bf16.msra.mxu0 0
        %1922 = vmatprep.subr.bf16.mxu0 0
        %1923 = vmatpush1.bf16.msra.mxu0 0
        %1924 = vmatprep.subr.bf16.mxu0 0
        %1925 = vmatpush1.bf16.msra.mxu0 0
        %1926 = vmatprep.mubr.bf16.mxu0 0
        %1927 = vmatmul.mubr.bf16.gmra.mrb[0].mxu0 %v1844
        %v1928 = vpop.f32.mrb[0].mxu0
        %v1929 = vadd.f32 0.0, %v1928
        %v1930 = vpop.f32.mrb[0].mxu0
        %v1931 = vpop.f32.mrb[0].mxu0
        %v1932 = vpop.f32.mrb[0].mxu0
        %1933 = vdwg.mxu0
        %v1942 = vunpack.c.l.b16 %v1773
        %v1943 = vunpack.c.l.b16 %v1774
        %v1944 = vunpack.c.l.b16 %v1775
        %v1945 = vunpack.c.l.b16 %v1776
        %v1946 = vunpack.c.l.b16 %v1777
        %v1947 = vunpack.c.l.b16 %v1778
        %v1948 = vunpack.c.l.b16 %v1779
        %v1949 = vunpack.c.l.b16 %v1780
        %v1950 = vsel %vm973, %v1943, %v1942
        %v1951 = vsel %vm975, %v1944, %v1950
        %v1952 = vsel %vm977, %v1945, %v1951
        %v1953 = vsel %vm979, %v1946, %v1952
        %v1954 = vsel %vm981, %v1947, %v1953
        %v1955 = vsel %vm983, %v1948, %v1954
        %v1956 = vsel %vm985, %v1949, %v1955
        %v1957 = vpack.c.b16 %v1956, %v1956
        %v1975 = vunpack.c.l.b16 %v1781
        %v1976 = vunpack.c.l.b16 %v1782
        %v1977 = vunpack.c.l.b16 %v1783
        %v1978 = vunpack.c.l.b16 %v1784
        %v1979 = vunpack.c.l.b16 %v1785
        %v1980 = vunpack.c.l.b16 %v1786
        %v1981 = vunpack.c.l.b16 %v1787
        %v1982 = vunpack.c.l.b16 %v1788
        %v1983 = vunpack.c.l.b16 %v1789
        %v1984 = vunpack.c.l.b16 %v1790
        %v1985 = vunpack.c.l.b16 %v1791
        %v1986 = vunpack.c.l.b16 %v1792
        %v1987 = vunpack.c.l.b16 %v1793
        %v1988 = vunpack.c.l.b16 %v1794
        %v1989 = vunpack.c.l.b16 %v1795
        %v1990 = vunpack.c.l.b16 %v1796
        %v1991 = vpack.c.b16 %v1976, %v1975
        %v1992 = vpack.c.b16 %v1978, %v1977
        %v1993 = vpack.c.b16 %v1980, %v1979
        %v1994 = vpack.c.b16 %v1982, %v1981
        %v1995 = vpack.c.b16 %v1984, %v1983
        %v1996 = vpack.c.b16 %v1986, %v1985
        %v1997 = vpack.c.b16 %v1988, %v1987
        %v1998 = vpack.c.b16 %v1990, %v1989
        %2007 = vmatprep.subr.bf16.mxu0 0
        %2008 = vmatpush1.bf16.msra.mxu0 %v1991
        %2009 = vmatprep.subr.bf16.mxu0 0
        %2010 = vmatpush1.bf16.msra.mxu0 %v1992
        %2011 = vmatprep.subr.bf16.mxu0 0
        %2012 = vmatpush1.bf16.msra.mxu0 %v1993
        %2013 = vmatprep.subr.bf16.mxu0 0
        %2014 = vmatpush1.bf16.msra.mxu0 %v1994
        %2015 = vmatprep.subr.bf16.mxu0 0
        %2016 = vmatpush1.bf16.msra.mxu0 %v1995
        %2017 = vmatprep.subr.bf16.mxu0 0
        %2018 = vmatpush1.bf16.msra.mxu0 %v1996
        %2019 = vmatprep.subr.bf16.mxu0 0
        %2020 = vmatpush1.bf16.msra.mxu0 %v1997
        %2021 = vmatprep.subr.bf16.mxu0 0
        %2022 = vmatpush1.bf16.msra.mxu0 %v1998
        %2023 = vmatprep.subr.bf16.mxu0 0
        %2024 = vmatpush1.bf16.msra.mxu0 0
        %2025 = vmatprep.subr.bf16.mxu0 0
        %2026 = vmatpush1.bf16.msra.mxu0 0
        %2027 = vmatprep.subr.bf16.mxu0 0
        %2028 = vmatpush1.bf16.msra.mxu0 0
        %2029 = vmatprep.subr.bf16.mxu0 0
        %2030 = vmatpush1.bf16.msra.mxu0 0
        %2031 = vmatprep.subr.bf16.mxu0 0
        %2032 = vmatpush1.bf16.msra.mxu0 0
        %2033 = vmatprep.subr.bf16.mxu0 0
        %2034 = vmatpush1.bf16.msra.mxu0 0
        %2035 = vmatprep.subr.bf16.mxu0 0
        %2036 = vmatpush1.bf16.msra.mxu0 0
        %2037 = vmatprep.subr.bf16.mxu0 0
        %2038 = vmatpush1.bf16.msra.mxu0 0
        %2039 = vmatprep.mubr.bf16.mxu0 0
        %2040 = vmatmul.mubr.bf16.gmra.mrb[0].mxu0 %v1957
        %v2041 = vpop.f32.mrb[0].mxu0
        %v2042 = vadd.f32 %v1929, %v2041
        %v2043 = vpop.f32.mrb[0].mxu0
        %v2044 = vpop.f32.mrb[0].mxu0
        %v2045 = vpop.f32.mrb[0].mxu0
        %2046 = vdwg.mxu0
        %v2047 = vadd.f32 %v2042, %v390
        %vm2048 = vcmp.gt.f32.partialorder %v2047, 0.0
        %v2049 = vmin.f32 %v2047, 0.0
        %v2050 = vmul.f32 %v2049, 1.442695
        %v2051 = vpow.pop %v2050
        %v2052 = vsub.f32 %v2051, 1.0
        %v2053 = vsel %vm2048, %v2047, %v2052
        %2054 = vst [vmem:[%s368] sm:$0xff] %v2053
        %s2055 = sand.u32 %s240, 1
        %s2056 = scalar_lea.sflag [#allocation3], %s2055
        %s2057 = sand.u32 %s240, 1
        %s2058 = smul.addr %s2057, 8
        %s2059 = scalar_lea.vmem [#allocation2], %s2058
        // Predicated region
        $region57: #{dgsr_forward.3} parent=55 // pred_check
          %p2060 = pneg %p250
        $region58: #{dgsr_forward.3} parent=55 // pred_check_branch
          %2062 = sbr.rel (%p2060) target = $region60
        $region59: #{dgsr_forward.3} parent=55 // pred_region
          %s2064 = ssub.s32 128, 128
          %2065 = vsyncadd %s2056, %s2064
          %s2066 = smul.addr %s23, 128
          %s2067 = scalar_lea.hbm %s9, %s2066
          %s2069 = sshll.u32 %s2059, 4
          %s2070 = int_to_ptr.vmem [resolvable:$true] %s2069
          %2072 = dma.vmem_to_hbm [thread:$0]  %s2070, 128, %s2067, %s2056
        $region60: #{dgsr_forward.3} parent=55 // pred_fallthru
          _
      $region56: #{dgsr_forward.3} parent=5 // pred_fallthru
        _
      %p2073 = scmp.le.s32.totalorder 2, %s18
      // Predicated region
      $region61: #{dgsr_forward.3} parent=5 // pred_check
        %p2074 = pneg %p2073
      $region62: #{dgsr_forward.3} parent=5 // pred_check_branch
        %2076 = sbr.rel (%p2074) target = $region64
      $region63: #{dgsr_forward.3} parent=5 // pred_region
        %s2077 = ssub.s32 %s18, 2
        // Predicated region
        $region65: #{dgsr_forward.3} parent=63 // pred_check
          %p2078 = pneg %p256
        $region66: #{dgsr_forward.3} parent=63 // pred_check_branch
          %2080 = sbr.rel (%p2078) target = $region68
        $region67: #{dgsr_forward.3} parent=63 // pred_region
          %s2081 = sand.u32 %s241, 1
          %s2082 = scalar_lea.sflag [#allocation3], %s2081
          %s2083 = sand.u32 %s241, 1
          %s2084 = smul.addr %s2083, 8
          %s2085 = scalar_lea.vmem [#allocation2], %s2084
          %2086 = dma.done %s2082, 128
        $region68: #{dgsr_forward.3} parent=63 // pred_fallthru
          _
      $region64: #{dgsr_forward.3} parent=5 // pred_fallthru
        _
    $region6: #{dgsr_forward.3} parent=1 // loop_footer
      %s22 = sadd.s32 1, %s18
    $region7: #{dgsr_forward.3} parent=1 // loop_footer_branch
      %17 = sbr.rel target = $region3
    $region8: #{dgsr_forward.3} parent=1 // loop_exit
      _
    %2087 = vsyncpa [#allocation3], 1
    %s2088 = scalar_lea.sflag [#allocation3], 1
    %2089 = vsyncpa %s2088, 1

</llo_original>
